<compile_context>
chip_gen: v5e
topology: v5e:2x2
jax: 0.10.0
libtpu: 0.0.40
codegen_flags: <defaults>
</compile_context>

<pallas_src>
import numpy as np
import jax
import jax.numpy as jnp
from jax.experimental import pallas as pl
from jax.experimental.pallas import tpu as pltpu


# ----------------------------------------------------------------------------------
# Fused full-sequence decoder kernel (grid axis = timestep)
# ----------------------------------------------------------------------------------
def fused_decoder_kernel(
    emb_ref, favg_ref, feats_ref, dlen_ref,
    w1f_ref, w1s_ref, b1_ref,
    wf_ref, bf_ref, wd_ref, bd_ref, wa_ref, ba_ref,
    w2_ref, b2_ref, wl_ref, bl_ref,
    pred_ref, alpha_ref,
    h1_s, c1_s, h2_s, c2_s, ia_s, gf_s,
):
    f32 = jnp.float32
    t = pl.program_id(0)
    Bp, D = h1_s.shape
    N = feats_ref.shape[1]
    A = wf_ref.shape[1]
    cdt = w1s_ref.dtype          # matmul compute dtype (f32 default; bf16 if weights are bf16)

    @pl.when(t == 0)
    def _init():
        z = jnp.zeros((Bp, D), f32)
        h1_s[...] = z
        c1_s[...] = z
        h2_s[...] = z
        c2_s[...] = z
        # time-invariant region projection, hoisted out of the per-step path
        feats0 = feats_ref[...]
        ia_s[...] = (
            jnp.dot(feats0.reshape(Bp * N, -1).astype(cdt), wf_ref[...],
                    preferred_element_type=f32).reshape(Bp, N, A)
            + bf_ref[...]
        )
        # time-invariant featsAvg slice of the TD-LSTM gate matmul (+ folded bias)
        gf_s[...] = (
            jnp.dot(favg_ref[...].astype(cdt), w1f_ref[...],
                    preferred_element_type=f32)
            + b1_ref[...]
        )

    def lstm_from_gates(gates, c_prev):
        # PyTorch LSTMCell gate order: i, f, g, o (elementwise math kept in f32)
        i = jax.nn.sigmoid(gates[:, 0:D])
        f = jax.nn.sigmoid(gates[:, D:2 * D])
        g = jnp.tanh(gates[:, 2 * D:3 * D])
        o = jax.nn.sigmoid(gates[:, 3 * D:4 * D])
        c_new = f * c_prev + i * g
        return o * jnp.tanh(c_new), c_new

    h1 = h1_s[...]
    c1 = c1_s[...]
    h2 = h2_s[...]
    c2 = c2_s[...]
    emb = emb_ref[0]                       # (Bp, E) embedding slice for this timestep
    feats = feats_ref[...]
    mask = dlen_ref[...] > t               # (Bp, 1): rows still decoding at this step

    # ---- top-down attention LSTM: fused gate matmul on [h2 | emb | h1]
    #      (featsAvg contribution + bias precomputed in gf_s at t == 0)
    x1 = jnp.concatenate([h2, emb, h1], axis=1)
    gates1 = jnp.dot(x1.astype(cdt), w1s_ref[...], preferred_element_type=f32) + gf_s[...]
    h1n, c1n = lstm_from_gates(gates1, c1)

    # ---- additive attention over regions (img_att precomputed at t == 0) ----
    h1_att = jnp.dot(h1n.astype(cdt), wd_ref[...], preferred_element_type=f32) + bd_ref[...]
    att1 = jnp.maximum(h1_att[:, None, :] + ia_s[...], 0.0)        # ReLU (dropout = identity)
    scores = jnp.sum(att1 * wa_ref[...], axis=-1) + ba_ref[...]    # (Bp, N)
    e = jnp.exp(scores - jnp.max(scores, axis=1, keepdims=True))
    alpha = e * pl.reciprocal(jnp.sum(e, axis=1, keepdims=True), approx=True)
    aw = jnp.sum(feats * alpha[:, :, None], axis=1)                # (Bp, F)

    # ---- language LSTM: single fused gate matmul on [aw_images | h1 | h2] ----
    x2 = jnp.concatenate([aw, h1n, h2], axis=1)
    gates2 = jnp.dot(x2.astype(cdt), w2_ref[...], preferred_element_type=f32) + b2_ref[...]
    h2n, c2n = lstm_from_gates(gates2, c2)

    # ---- vocab projection (dropout = identity) ----
    preds = jnp.dot(h2n.astype(cdt), wl_ref[...], preferred_element_type=f32) + bl_ref[...]

    # Rows past their decode length keep their old state and write zero predictions
    # (equivalent to PyTorch's [:bSize] slicing because the batch is sorted by length).
    h1_s[...] = jnp.where(mask, h1n, h1)
    c1_s[...] = jnp.where(mask, c1n, c1)
    h2_s[...] = jnp.where(mask, h2n, h2)
    c2_s[...] = jnp.where(mask, c2n, c2)
    pred_ref[0] = jnp.where(mask, preds, 0.0)
    alpha_ref[...] = alpha        # resident output block -> last step's value is written back


def build_decoder_call(maxT, Bp, N, F, D, E, A, Vp):
    r2 = lambda shape: pl.BlockSpec(shape, lambda t: (0, 0))
    r3 = lambda shape: pl.BlockSpec(shape, lambda t: (0, 0, 0))
    K1s = 2 * D + E                          # per-step TD-LSTM contraction dim [h2|emb|h1]
    K2 = F + 2 * D                           # fused language-LSTM contraction dim

    in_specs = [
        pl.BlockSpec((1, Bp, E), lambda t: (t, 0, 0)),   # per-step embedding (pipelined)
        r2((Bp, F)),                                     # featsAvg       (resident)
        r3((Bp, N, F)),                                  # feats          (resident)
        r2((Bp, 1)),                                     # decode lengths (resident)
        r2((F, 4 * D)),                                  # TD weights: featsAvg slice
        r2((K1s, 4 * D)), r2((1, 4 * D)),                # TD weights: [h2|emb|h1] slice + bias
        r2((F, A)), r2((1, A)),                          # att_feat
        r2((D, A)), r2((1, A)),                          # att_decoder
        r2((1, A)), r2((1, 1)),                          # att (score) weights
        r2((K2, 4 * D)), r2((1, 4 * D)),                 # fused language weights / bias
        r2((D, Vp)), r2((1, Vp)),                        # vocab projection (lane-padded)
    ]
    out_specs = (
        pl.BlockSpec((1, Bp, Vp), lambda t: (t, 0, 0)),  # per-step predictions
        pl.BlockSpec((Bp, N), lambda t: (0, 0)),         # last-step attention weights
    )
    out_shape = (
        jax.ShapeDtypeStruct((maxT, Bp, Vp), jnp.float32),
        jax.ShapeDtypeStruct((Bp, N), jnp.float32),
    )
    scratch_shapes = [
        pltpu.VMEM((Bp, D), jnp.float32),     # h1
        pltpu.VMEM((Bp, D), jnp.float32),     # c1
        pltpu.VMEM((Bp, D), jnp.float32),     # h2
        pltpu.VMEM((Bp, D), jnp.float32),     # c2
        pltpu.VMEM((Bp, N, A), jnp.float32),  # img_att (time-invariant)
        pltpu.VMEM((Bp, 4 * D), jnp.float32), # featsAvg gate contribution (time-invariant)
    ]

    flops = 2 * Bp * (
        maxT * (K1s * 4 * D + D * A + K2 * 4 * D + D * Vp + 3 * N * A + N * F)
        + N * F * A + F * 4 * D
    )
    ins_elems = (maxT * Bp * E + Bp * F + Bp * N * F + Bp
                 + F * 4 * D + K1s * 4 * D + 4 * D
                 + F * A + A + D * A + A + A + 1
                 + K2 * 4 * D + 4 * D + D * Vp + Vp)
    outs_elems = maxT * Bp * Vp + Bp * N
    cost = pl.CostEstimate(
        flops=int(flops),
        transcendentals=int(maxT * Bp * (8 * D + N)),
        bytes_accessed=int(4 * (ins_elems + outs_elems)))

    return pl.pallas_call(
        fused_decoder_kernel,
        out_shape=out_shape,
        grid_spec=pltpu.PrefetchScalarGridSpec(
            num_scalar_prefetch=0,
            grid=(maxT,),
            in_specs=in_specs,
            out_specs=out_specs,
            scratch_shapes=scratch_shapes),
        compiler_params=pltpu.CompilerParams(
            dimension_semantics=("arbitrary",)),   # timestep axis is a recurrence
        cost_estimate=cost,
    )


# ----------------------------------------------------------------------------------
# Parameters (deterministic synthetic init; weight_norm folded: w = g * v / ||v||)
# ----------------------------------------------------------------------------------
def init_params(key, attSize, embedSize, decodeSize, vocabSize, featureSize):
    keys = iter(jax.random.split(key, 24))
    nk = lambda: next(keys)
    U = lambda k, shape, lo, hi: jax.random.uniform(k, shape, jnp.float32, lo, hi)

    def wn_weight(k, out_dim, in_dim):
        kv, kg = jax.random.split(k)
        v = U(kv, (out_dim, in_dim), -0.1, 0.1)
        g = U(kg, (out_dim, 1), 0.5, 1.5)
        return g * v / (jnp.linalg.norm(v, axis=1, keepdims=True) + 1e-12)

    D = decodeSize
    s = 1.0 / float(np.sqrt(D))
    return dict(
        attSize=attSize, embedSize=embedSize, decodeSize=decodeSize,
        vocabSize=vocabSize, featureSize=featureSize,
        # AttModule linears (weight-normed)
        w_feat=wn_weight(nk(), attSize, featureSize), b_feat=U(nk(), (attSize,), -0.05, 0.05),
        w_dec=wn_weight(nk(), attSize, decodeSize),   b_dec=U(nk(), (attSize,), -0.05, 0.05),
        w_att=wn_weight(nk(), 1, attSize),            b_att=U(nk(), (1,), -0.05, 0.05),
        # embedding (uniform(-0.1, 0.1) per init_weights)
        emb_table=U(nk(), (vocabSize, embedSize), -0.1, 0.1),
        # TD LSTMCell(embed+feature+decode -> decode); input cols ordered [h2 | featsAvg | emb]
        w_ih_td=U(nk(), (4 * D, decodeSize + featureSize + embedSize), -s, s),
        w_hh_td=U(nk(), (4 * D, D), -s, s),
        b_ih_td=U(nk(), (4 * D,), -s, s), b_hh_td=U(nk(), (4 * D,), -s, s),
        # language LSTMCell(feature+decode -> decode); input cols ordered [aw_images | h1]
        w_ih_lg=U(nk(), (4 * D, featureSize + decodeSize), -s, s),
        w_hh_lg=U(nk(), (4 * D, D), -s, s),
        b_ih_lg=U(nk(), (4 * D,), -s, s), b_hh_lg=U(nk(), (4 * D,), -s, s),
        # output linear: weight uniform(-0.1,0.1), bias 0 (per init_weights)
        w_lin=U(nk(), (vocabSize, D), -0.1, 0.1),
        b_lin=jnp.zeros((vocabSize,), jnp.float32),
    )


def kernel_weight_args(p, Vp, matmul_dtype=jnp.float32):
    D, F, E = p["decodeSize"], p["featureSize"], p["embedSize"]
    A, V = p["attSize"], p["vocabSize"]
    # TD-LSTM input weight columns are ordered [h2(D) | featsAvg(F) | emb(E)].
    w_ih_td_T = p["w_ih_td"].T                            # (D+F+E, 4D)
    w1_favg = w_ih_td_T[D:D + F, :]                       # featsAvg slice, time-invariant
    w1_step = jnp.concatenate(                            # [h2 | emb | h1] -> (2D+E, 4D)
        [w_ih_td_T[0:D, :], w_ih_td_T[D + F:D + F + E, :], p["w_hh_td"].T], axis=0)
    b1 = (p["b_ih_td"] + p["b_hh_td"]).reshape(1, 4 * D)
    # fused language-LSTM weight for x2 = [aw_images | h1 | h2] -> (F+2D, 4D)
    w2 = jnp.concatenate([p["w_ih_lg"].T, p["w_hh_lg"].T], axis=0)
    b2 = (p["b_ih_lg"] + p["b_hh_lg"]).reshape(1, 4 * D)
    # vocab projection padded to a lane-dense width Vp (extra cols are exact zeros)
    w_lin = jnp.pad(p["w_lin"], ((0, Vp - V), (0, 0)))
    b_lin = jnp.pad(p["b_lin"], ((0, Vp - V),))
    c = lambda w: w.astype(matmul_dtype)
    return (
        c(w1_favg), c(w1_step), b1,
        c(p["w_feat"].T), p["b_feat"].reshape(1, A),
        c(p["w_dec"].T), p["b_dec"].reshape(1, A),
        p["w_att"], p["b_att"].reshape(1, 1),
        c(w2), b2,
        c(w_lin.T), b_lin.reshape(1, Vp),
    )


def _round_up(x, m):
    return ((x + m - 1) // m) * m


# ----------------------------------------------------------------------------------
# Forward pass (glue: sorting, embedding gather, padding; all per-step compute in Pallas)
# ----------------------------------------------------------------------------------
def decoder_forward(params, feats, sequences, sizes, *, matmul_dtype=jnp.float32):
    B, Nreg, F = feats.shape
    D, V = params["decodeSize"], params["vocabSize"]
    E, A = params["embedSize"], params["attSize"]

    sizes_flat = jnp.squeeze(sizes, axis=1)
    positions = jnp.argsort(-sizes_flat)      # descending (tie order may differ from torch.sort)
    sizes_sorted = sizes_flat[positions]
    feats_s = feats[positions]
    sequences_s = sequences[positions]
    featsAvg = jnp.mean(feats_s, axis=1)
    embeddings = jnp.take(params["emb_table"], sequences_s, axis=0)   # (B, T, E)

    # maxT must be static for the grid (same host sync the torch module does via .tolist()).
    decode_lengths = [int(s) - 1 for s in np.asarray(sizes_sorted)]
    maxT = max(decode_lengths)

    # lane/sublane-friendly padding: batch -> multiple of 8, vocab -> multiple of 128
    Bp = _round_up(B, 8)
    Vp = _round_up(V, 128)
    pb = Bp - B
    feats_p = jnp.pad(feats_s, ((0, pb), (0, 0), (0, 0)))
    favg_p = jnp.pad(featsAvg, ((0, pb), (0, 0)))
    emb_steps = jnp.pad(jnp.transpose(embeddings[:, :maxT, :], (1, 0, 2)),
                        ((0, 0), (0, pb), (0, 0)))                    # (maxT, Bp, E)
    dlen = jnp.pad((sizes_sorted - 1).astype(jnp.int32), ((0, pb),)).reshape(Bp, 1)

    step_fn = build_decoder_call(maxT, Bp, Nreg, F, D, E, A, Vp)
    wargs = kernel_weight_args(params, Vp, matmul_dtype)
    preds_tbv, alpha_p = step_fn(emb_steps, favg_p, feats_p, dlen, *wargs)

    preds = jnp.transpose(preds_tbv, (1, 0, 2))[:B, :, :V]            # (B, maxT, V)
    # NOTE: torch returns the last timestep's attention only for the rows still active;
    # here alpha has all B rows (inactive rows are extra, never used by torch either).
    alpha = alpha_p[:B]
    return preds, sequences_s, decode_lengths, alpha, positions


# ----------------------------------------------------------------------------------
# Pure-JAX reference (mirrors the PyTorch forward with [:bSize] slicing) for checking
# ----------------------------------------------------------------------------------
def reference_forward(p, feats, sequences, sizes):
    B, Nreg, F = feats.shape
    D, V = p["decodeSize"], p["vocabSize"]

    def lstm_cell(x, h, c, w_ih, w_hh, b_ih, b_hh):
        g = x @ w_ih.T + b_ih + h @ w_hh.T + b_hh
        i = jax.nn.sigmoid(g[:, :D]); f = jax.nn.sigmoid(g[:, D:2 * D])
        gg = jnp.tanh(g[:, 2 * D:3 * D]); o = jax.nn.sigmoid(g[:, 3 * D:4 * D])
        c_new = f * c + i * gg
        return o * jnp.tanh(c_new), c_new

    def att_module(BU_feats, h1):
        h1_att = h1 @ p["w_dec"].T + p["b_dec"]
        img_att = jnp.einsum("bnf,af->bna", BU_feats, p["w_feat"]) + p["b_feat"]
        att1 = jax.nn.relu(h1_att[:, None, :] + img_att)
        att2 = jnp.einsum("bna,oa->bno", att1, p["w_att"]) + p["b_att"]
        sm = jax.nn.softmax(att2[..., 0], axis=1)
        return jnp.sum(BU_feats * sm[:, :, None], axis=1), sm

    sizes_flat = jnp.squeeze(sizes, 1)
    order = jnp.argsort(-sizes_flat)
    feats = feats[order]; sequences = sequences[order]
    featsAvg = jnp.mean(feats, axis=1)
    embeddings = jnp.take(p["emb_table"], sequences, axis=0)
    decode_lengths = [int(s) - 1 for s in np.asarray(sizes_flat[order])]
    maxT = max(decode_lengths)

    h1 = c1 = h2 = c2 = jnp.zeros((B, D), jnp.float32)
    preds = np.zeros((B, maxT, V), np.float32)
    sm = None
    bS = B
    for t in range(maxT):
        bS = sum(dl > t for dl in decode_lengths)
        x1 = jnp.concatenate([h2[:bS], featsAvg[:bS], embeddings[:bS, t, :]], axis=1)
        h1b, c1b = lstm_cell(x1, h1[:bS], c1[:bS], p["w_ih_td"], p["w_hh_td"],
                             p["b_ih_td"], p["b_hh_td"])
        h1 = h1.at[:bS].set(h1b); c1 = c1.at[:bS].set(c1b)
        aw, sm = att_module(feats[:bS], h1[:bS])
        x2 = jnp.concatenate([aw, h1[:bS]], axis=1)
        h2b, c2b = lstm_cell(x2, h2[:bS], c2[:bS], p["w_ih_lg"], p["w_hh_lg"],
                             p["b_ih_lg"], p["b_hh_lg"])
        h2 = h2.at[:bS].set(h2b); c2 = c2.at[:bS].set(c2b)
        preds[:bS, t, :] = np.asarray(h2[:bS] @ p["w_lin"].T + p["b_lin"])
    return jnp.asarray(preds), sm, bS


# ----------------------------------------------------------------------------------
if __name__ == "__main__":
    attSize, embedSize, decodeSize, vocabSize, featureSize = 32, 16, 32, 48, 64
    B, Nreg, T = 4, 8, 7

    key = jax.random.PRNGKey(0)
    kp, kf, ks, kz = jax.random.split(key, 4)
    params = init_params(kp, attSize, embedSize, decodeSize, vocabSize, featureSize)

    feats = jax.random.normal(kf, (B, Nreg, featureSize), jnp.float32) * 0.5
    sequences = jax.random.randint(ks, (B, T), 0, vocabSize, jnp.int32)
    sizes = jax.random.randint(kz, (B, 1), 2, T + 1, jnp.int32)   # lengths in [2, T]

    preds, seq_sorted, dec_lens, alpha, positions = decoder_forward(
        params, feats, sequences, sizes)
    jax.block_until_ready(preds)

    preds_ref, alpha_ref, bS_last = reference_forward(params, feats, sequences, sizes)
    np.testing.assert_allclose(np.asarray(preds), np.asarray(preds_ref),
                               rtol=5e-2, atol=2e-2)
    np.testing.assert_allclose(np.asarray(alpha)[:bS_last], np.asarray(alpha_ref),
                               rtol=5e-2, atol=2e-2)
    print("KERNEL_OK")
</pallas_src>

<mosaic_0001>
module attributes {stable_mosaic.version = 11 : i64} {
  func.func @fused_decoder_kernel(%arg0: i32, %arg1: memref<1x8x16xf32, #tpu.memory_space<vmem>>, %arg2: memref<8x64xf32, #tpu.memory_space<vmem>>, %arg3: memref<8x8x64xf32, #tpu.memory_space<vmem>>, %arg4: memref<8x1xi32, #tpu.memory_space<vmem>>, %arg5: memref<64x128xf32, #tpu.memory_space<vmem>>, %arg6: memref<80x128xf32, #tpu.memory_space<vmem>>, %arg7: memref<1x128xf32, #tpu.memory_space<vmem>>, %arg8: memref<64x32xf32, #tpu.memory_space<vmem>>, %arg9: memref<1x32xf32, #tpu.memory_space<vmem>>, %arg10: memref<32x32xf32, #tpu.memory_space<vmem>>, %arg11: memref<1x32xf32, #tpu.memory_space<vmem>>, %arg12: memref<1x32xf32, #tpu.memory_space<vmem>>, %arg13: memref<1x1xf32, #tpu.memory_space<vmem>>, %arg14: memref<128x128xf32, #tpu.memory_space<vmem>>, %arg15: memref<1x128xf32, #tpu.memory_space<vmem>>, %arg16: memref<32x128xf32, #tpu.memory_space<vmem>>, %arg17: memref<1x128xf32, #tpu.memory_space<vmem>>, %arg18: memref<1x8x128xf32, #tpu.memory_space<vmem>>, %arg19: memref<8x8xf32, #tpu.memory_space<vmem>>, %arg20: memref<8x32xf32, #tpu.memory_space<vmem>>, %arg21: memref<8x32xf32, #tpu.memory_space<vmem>>, %arg22: memref<8x32xf32, #tpu.memory_space<vmem>>, %arg23: memref<8x32xf32, #tpu.memory_space<vmem>>, %arg24: memref<8x8x32xf32, #tpu.memory_space<vmem>>, %arg25: memref<8x128xf32, #tpu.memory_space<vmem>>) attributes {dimension_semantics = [#tpu.dimension_semantics<arbitrary>], iteration_bounds = array<i64: 4>, scalar_prefetch = 0 : i64, scratch_operands = 6 : i64, tpu.core_type = #tpu.core_type<tc>, window_params = [{transform_indices = @transform_0, window_bounds = array<i64: 1, 8, 16>}, {pipeline_mode = #tpu.pipeline_mode<synchronous>, transform_indices = @transform_1, window_bounds = array<i64: 8, 64>}, {pipeline_mode = #tpu.pipeline_mode<synchronous>, transform_indices = @transform_2, window_bounds = array<i64: 8, 8, 64>}, {pipeline_mode = #tpu.pipeline_mode<synchronous>, transform_indices = @transform_3, window_bounds = array<i64: 8, 1>}, {pipeline_mode = #tpu.pipeline_mode<synchronous>, transform_indices = @transform_4, window_bounds = array<i64: 64, 128>}, {pipeline_mode = #tpu.pipeline_mode<synchronous>, transform_indices = @transform_5, window_bounds = array<i64: 80, 128>}, {pipeline_mode = #tpu.pipeline_mode<synchronous>, transform_indices = @transform_6, window_bounds = array<i64: 1, 128>}, {pipeline_mode = #tpu.pipeline_mode<synchronous>, transform_indices = @transform_7, window_bounds = array<i64: 64, 32>}, {pipeline_mode = #tpu.pipeline_mode<synchronous>, transform_indices = @transform_8, window_bounds = array<i64: 1, 32>}, {pipeline_mode = #tpu.pipeline_mode<synchronous>, transform_indices = @transform_9, window_bounds = array<i64: 32, 32>}, {pipeline_mode = #tpu.pipeline_mode<synchronous>, transform_indices = @transform_10, window_bounds = array<i64: 1, 32>}, {pipeline_mode = #tpu.pipeline_mode<synchronous>, transform_indices = @transform_11, window_bounds = array<i64: 1, 32>}, {pipeline_mode = #tpu.pipeline_mode<synchronous>, transform_indices = @transform_12, window_bounds = array<i64: 1, 1>}, {pipeline_mode = #tpu.pipeline_mode<synchronous>, transform_indices = @transform_13, window_bounds = array<i64: 128, 128>}, {pipeline_mode = #tpu.pipeline_mode<synchronous>, transform_indices = @transform_14, window_bounds = array<i64: 1, 128>}, {pipeline_mode = #tpu.pipeline_mode<synchronous>, transform_indices = @transform_15, window_bounds = array<i64: 32, 128>}, {pipeline_mode = #tpu.pipeline_mode<synchronous>, transform_indices = @transform_16, window_bounds = array<i64: 1, 128>}, {transform_indices = @transform_17, window_bounds = array<i64: 1, 8, 128>}, {pipeline_mode = #tpu.pipeline_mode<synchronous>, transform_indices = @transform_18, window_bounds = array<i64: 8, 8>}]} {
    %c0_i32 = arith.constant 0 : i32
    %0 = arith.cmpi eq, %arg0, %c0_i32 : i32
    %1 = arith.extui %0 : i1 to i32
    %c0_i32_0 = arith.constant 0 : i32
    %2 = arith.cmpi ne, %1, %c0_i32_0 : i32
    scf.if %2 {
      %cst_67 = arith.constant 0.000000e+00 : f32
      %136 = vector.broadcast %cst_67 : f32 to vector<8x32xf32>
      %c0_68 = arith.constant 0 : index
      %c0_69 = arith.constant 0 : index
      %137 = vector.load %arg20[%c0_68, %c0_69] : memref<8x32xf32, #tpu.memory_space<vmem>>, vector<8x32xf32>
      tpu.vector_store %arg20[%c0_68, %c0_69], %136 {strides = array<i32>} : memref<8x32xf32, #tpu.memory_space<vmem>>, vector<8x32xf32>,
      %c0_70 = arith.constant 0 : index
      %c0_71 = arith.constant 0 : index
      %138 = vector.load %arg21[%c0_70, %c0_71] : memref<8x32xf32, #tpu.memory_space<vmem>>, vector<8x32xf32>
      tpu.vector_store %arg21[%c0_70, %c0_71], %136 {strides = array<i32>} : memref<8x32xf32, #tpu.memory_space<vmem>>, vector<8x32xf32>,
      %c0_72 = arith.constant 0 : index
      %c0_73 = arith.constant 0 : index
      %139 = vector.load %arg22[%c0_72, %c0_73] : memref<8x32xf32, #tpu.memory_space<vmem>>, vector<8x32xf32>
      tpu.vector_store %arg22[%c0_72, %c0_73], %136 {strides = array<i32>} : memref<8x32xf32, #tpu.memory_space<vmem>>, vector<8x32xf32>,
      %c0_74 = arith.constant 0 : index
      %c0_75 = arith.constant 0 : index
      %140 = vector.load %arg23[%c0_74, %c0_75] : memref<8x32xf32, #tpu.memory_space<vmem>>, vector<8x32xf32>
      tpu.vector_store %arg23[%c0_74, %c0_75], %136 {strides = array<i32>} : memref<8x32xf32, #tpu.memory_space<vmem>>, vector<8x32xf32>,
      %c0_76 = arith.constant 0 : index
      %c0_77 = arith.constant 0 : index
      %c0_78 = arith.constant 0 : index
      %141 = vector.load %arg3[%c0_76, %c0_77, %c0_78] : memref<8x8x64xf32, #tpu.memory_space<vmem>>, vector<8x8x64xf32>
      %142 = vector.shape_cast %141 : vector<8x8x64xf32> to vector<64x64xf32>
      %c0_79 = arith.constant 0 : index
      %c0_80 = arith.constant 0 : index
      %143 = vector.load %arg8[%c0_79, %c0_80] : memref<64x32xf32, #tpu.memory_space<vmem>>, vector<64x32xf32>
      %cst_81 = arith.constant dense<0.000000e+00> : vector<64x32xf32>
      %144 = tpu.matmul %142, %143, %cst_81 {dimension_numbers = #tpu.dot_dimension_numbers<[1], [0], [0], [1], [0, 0, 1, 1], [], []>} : vector<64x64xf32>, vector<64x32xf32>, vector<64x32xf32> -> vector<64x32xf32>
      %145 = vector.shape_cast %144 : vector<64x32xf32> to vector<8x8x32xf32>
      %c0_82 = arith.constant 0 : index
      %c0_83 = arith.constant 0 : index
      %146 = vector.load %arg9[%c0_82, %c0_83] : memref<1x32xf32, #tpu.memory_space<vmem>>, vector<1x32xf32>
      %147 = vector.shape_cast %146 : vector<1x32xf32> to vector<1x1x32xf32>
      %148 = vector.broadcast %147 : vector<1x1x32xf32> to vector<8x8x32xf32>
      %149 = arith.addf %145, %148 : vector<8x8x32xf32>
      %c0_84 = arith.constant 0 : index
      %c0_85 = arith.constant 0 : index
      %c0_86 = arith.constant 0 : index
      %150 = vector.load %arg24[%c0_84, %c0_85, %c0_86] : memref<8x8x32xf32, #tpu.memory_space<vmem>>, vector<8x8x32xf32>
      tpu.vector_store %arg24[%c0_84, %c0_85, %c0_86], %149 {strides = array<i32>} : memref<8x8x32xf32, #tpu.memory_space<vmem>>, vector<8x8x32xf32>,
      %c0_87 = arith.constant 0 : index
      %c0_88 = arith.constant 0 : index
      %151 = vector.load %arg2[%c0_87, %c0_88] : memref<8x64xf32, #tpu.memory_space<vmem>>, vector<8x64xf32>
      %c0_89 = arith.constant 0 : index
      %c0_90 = arith.constant 0 : index
      %152 = vector.load %arg5[%c0_89, %c0_90] : memref<64x128xf32, #tpu.memory_space<vmem>>, vector<64x128xf32>
      %cst_91 = arith.constant dense<0.000000e+00> : vector<8x128xf32>
      %153 = tpu.matmul %151, %152, %cst_91 {dimension_numbers = #tpu.dot_dimension_numbers<[1], [0], [0], [1], [0, 0, 1, 1], [], []>} : vector<8x64xf32>, vector<64x128xf32>, vector<8x128xf32> -> vector<8x128xf32>
      %c0_92 = arith.constant 0 : index
      %c0_93 = arith.constant 0 : index
      %154 = vector.load %arg7[%c0_92, %c0_93] : memref<1x128xf32, #tpu.memory_space<vmem>>, vector<1x128xf32>
      %155 = vector.broadcast %154 : vector<1x128xf32> to vector<8x128xf32>
      %156 = arith.addf %153, %155 : vector<8x128xf32>
      %c0_94 = arith.constant 0 : index
      %c0_95 = arith.constant 0 : index
      %157 = vector.load %arg25[%c0_94, %c0_95] : memref<8x128xf32, #tpu.memory_space<vmem>>, vector<8x128xf32>
      tpu.vector_store %arg25[%c0_94, %c0_95], %156 {strides = array<i32>} : memref<8x128xf32, #tpu.memory_space<vmem>>, vector<8x128xf32>,
    } else {
    }
    %c0 = arith.constant 0 : index
    %c0_1 = arith.constant 0 : index
    %3 = vector.load %arg20[%c0, %c0_1] : memref<8x32xf32, #tpu.memory_space<vmem>>, vector<8x32xf32>
    %c0_2 = arith.constant 0 : index
    %c0_3 = arith.constant 0 : index
    %4 = vector.load %arg21[%c0_2, %c0_3] : memref<8x32xf32, #tpu.memory_space<vmem>>, vector<8x32xf32>
    %c0_4 = arith.constant 0 : index
    %c0_5 = arith.constant 0 : index
    %5 = vector.load %arg22[%c0_4, %c0_5] : memref<8x32xf32, #tpu.memory_space<vmem>>, vector<8x32xf32>
    %c0_6 = arith.constant 0 : index
    %c0_7 = arith.constant 0 : index
    %6 = vector.load %arg23[%c0_6, %c0_7] : memref<8x32xf32, #tpu.memory_space<vmem>>, vector<8x32xf32>
    %c0_8 = arith.constant 0 : index
    %c0_9 = arith.constant 0 : index
    %c0_10 = arith.constant 0 : index
    %7 = vector.load %arg1[%c0_8, %c0_9, %c0_10] : memref<1x8x16xf32, #tpu.memory_space<vmem>>, vector<1x8x16xf32>
    %8 = vector.shape_cast %7 : vector<1x8x16xf32> to vector<8x16xf32>
    %c0_11 = arith.constant 0 : index
    %c0_12 = arith.constant 0 : index
    %c0_13 = arith.constant 0 : index
    %9 = vector.load %arg3[%c0_11, %c0_12, %c0_13] : memref<8x8x64xf32, #tpu.memory_space<vmem>>, vector<8x8x64xf32>
    %c0_14 = arith.constant 0 : index
    %c0_15 = arith.constant 0 : index
    %10 = vector.load %arg4[%c0_14, %c0_15] : memref<8x1xi32, #tpu.memory_space<vmem>>, vector<8x1xi32>
    %11 = vector.broadcast %arg0 : i32 to vector<8x1xi32>
    %12 = arith.cmpi sgt, %10, %11 : vector<8x1xi32>
    %13 = tpu.concatenate %5, %8, %3 in 1 : vector<8x32xf32>, vector<8x16xf32>, vector<8x32xf32> -> vector<8x80xf32>
    %c0_16 = arith.constant 0 : index
    %c0_17 = arith.constant 0 : index
    %14 = vector.load %arg6[%c0_16, %c0_17] : memref<80x128xf32, #tpu.memory_space<vmem>>, vector<80x128xf32>
    %cst = arith.constant dense<0.000000e+00> : vector<8x128xf32>
    %15 = tpu.matmul %13, %14, %cst {dimension_numbers = #tpu.dot_dimension_numbers<[1], [0], [0], [1], [0, 0, 1, 1], [], []>} : vector<8x80xf32>, vector<80x128xf32>, vector<8x128xf32> -> vector<8x128xf32>
    %c0_18 = arith.constant 0 : index
    %c0_19 = arith.constant 0 : index
    %16 = vector.load %arg25[%c0_18, %c0_19] : memref<8x128xf32, #tpu.memory_space<vmem>>, vector<8x128xf32>
    %17 = arith.addf %15, %16 : vector<8x128xf32>
    %18 = vector.extract_strided_slice %17 {offsets = [0, 0], sizes = [8, 32], strides = [1, 1]} : vector<8x128xf32> to vector<8x32xf32>
    %19 = arith.negf %18 : vector<8x32xf32>
    %20 = math.exp %19 : vector<8x32xf32>
    %cst_20 = arith.constant 1.000000e+00 : f32
    %21 = vector.broadcast %cst_20 : f32 to vector<8x32xf32>
    %22 = arith.addf %21, %20 : vector<8x32xf32>
    %23 = arith.divf %21, %22 : vector<8x32xf32>
    %24 = vector.extract_strided_slice %17 {offsets = [0, 32], sizes = [8, 32], strides = [1, 1]} : vector<8x128xf32> to vector<8x32xf32>
    %25 = arith.negf %24 : vector<8x32xf32>
    %26 = math.exp %25 : vector<8x32xf32>
    %cst_21 = arith.constant 1.000000e+00 : f32
    %27 = vector.broadcast %cst_21 : f32 to vector<8x32xf32>
    %28 = arith.addf %27, %26 : vector<8x32xf32>
    %29 = arith.divf %27, %28 : vector<8x32xf32>
    %30 = vector.extract_strided_slice %17 {offsets = [0, 64], sizes = [8, 32], strides = [1, 1]} : vector<8x128xf32> to vector<8x32xf32>
    %31 = math.tanh %30 : vector<8x32xf32>
    %32 = vector.extract_strided_slice %17 {offsets = [0, 96], sizes = [8, 32], strides = [1, 1]} : vector<8x128xf32> to vector<8x32xf32>
    %33 = arith.negf %32 : vector<8x32xf32>
    %34 = math.exp %33 : vector<8x32xf32>
    %cst_22 = arith.constant 1.000000e+00 : f32
    %35 = vector.broadcast %cst_22 : f32 to vector<8x32xf32>
    %36 = arith.addf %35, %34 : vector<8x32xf32>
    %37 = arith.divf %35, %36 : vector<8x32xf32>
    %38 = arith.mulf %29, %4 : vector<8x32xf32>
    %39 = arith.mulf %23, %31 : vector<8x32xf32>
    %40 = arith.addf %38, %39 : vector<8x32xf32>
    %41 = math.tanh %40 : vector<8x32xf32>
    %42 = arith.mulf %37, %41 : vector<8x32xf32>
    %c0_23 = arith.constant 0 : index
    %c0_24 = arith.constant 0 : index
    %43 = vector.load %arg10[%c0_23, %c0_24] : memref<32x32xf32, #tpu.memory_space<vmem>>, vector<32x32xf32>
    %cst_25 = arith.constant dense<0.000000e+00> : vector<8x32xf32>
    %44 = tpu.matmul %42, %43, %cst_25 {dimension_numbers = #tpu.dot_dimension_numbers<[1], [0], [0], [1], [0, 0, 1, 1], [], []>} : vector<8x32xf32>, vector<32x32xf32>, vector<8x32xf32> -> vector<8x32xf32>
    %c0_26 = arith.constant 0 : index
    %c0_27 = arith.constant 0 : index
    %45 = vector.load %arg11[%c0_26, %c0_27] : memref<1x32xf32, #tpu.memory_space<vmem>>, vector<1x32xf32>
    %46 = vector.broadcast %45 : vector<1x32xf32> to vector<8x32xf32>
    %47 = arith.addf %44, %46 : vector<8x32xf32>
    %48 = vector.shape_cast %47 : vector<8x32xf32> to vector<8x1x32xf32>
    %c0_28 = arith.constant 0 : index
    %c0_29 = arith.constant 0 : index
    %c0_30 = arith.constant 0 : index
    %49 = vector.load %arg24[%c0_28, %c0_29, %c0_30] : memref<8x8x32xf32, #tpu.memory_space<vmem>>, vector<8x8x32xf32>
    %50 = vector.broadcast %48 : vector<8x1x32xf32> to vector<8x8x32xf32>
    %51 = arith.addf %50, %49 : vector<8x8x32xf32>
    %cst_31 = arith.constant 0.000000e+00 : f32
    %52 = vector.broadcast %cst_31 : f32 to vector<8x8x32xf32>
    %53 = arith.maximumf %51, %52 : vector<8x8x32xf32>
    %c0_32 = arith.constant 0 : index
    %c0_33 = arith.constant 0 : index
    %54 = vector.load %arg12[%c0_32, %c0_33] : memref<1x32xf32, #tpu.memory_space<vmem>>, vector<1x32xf32>
    %55 = vector.shape_cast %54 : vector<1x32xf32> to vector<1x1x32xf32>
    %56 = vector.broadcast %55 : vector<1x1x32xf32> to vector<8x8x32xf32>
    %57 = arith.mulf %53, %56 : vector<8x8x32xf32>
    %cst_34 = arith.constant dense<0.000000e+00> : vector<8x8xf32>
    %58 = vector.multi_reduction <add>, %57, %cst_34 [2] : vector<8x8x32xf32> to vector<8x8xf32>
    %c0_35 = arith.constant 0 : index
    %c0_36 = arith.constant 0 : index
    %59 = vector.load %arg13[%c0_35, %c0_36] : memref<1x1xf32, #tpu.memory_space<vmem>>, vector<1x1xf32>
    %60 = vector.broadcast %59 : vector<1x1xf32> to vector<8x8xf32>
    %61 = arith.addf %58, %60 : vector<8x8xf32>
    %cst_37 = arith.constant dense<0xFF800000> : vector<8xf32>
    %62 = vector.multi_reduction <maximumf>, %61, %cst_37 [1] : vector<8x8xf32> to vector<8xf32>
    %63 = vector.shape_cast %62 : vector<8xf32> to vector<8x1xf32>
    %64 = vector.broadcast %63 : vector<8x1xf32> to vector<8x8xf32>
    %65 = arith.subf %61, %64 : vector<8x8xf32>
    %66 = math.exp %65 : vector<8x8xf32>
    %cst_38 = arith.constant dense<0.000000e+00> : vector<8xf32>
    %67 = vector.multi_reduction <add>, %66, %cst_38 [1] : vector<8x8xf32> to vector<8xf32>
    %68 = vector.shape_cast %67 : vector<8xf32> to vector<8x1xf32>
    %69 = tpu.reciprocal %68 {approx = true} : vector<8x1xf32> -> vector<8x1xf32>
    %70 = vector.broadcast %69 : vector<8x1xf32> to vector<8x8xf32>
    %71 = arith.mulf %66, %70 : vector<8x8xf32>
    %72 = vector.shape_cast %71 : vector<8x8xf32> to vector<8x8x1xf32>
    %73 = vector.broadcast %72 : vector<8x8x1xf32> to vector<8x8x64xf32>
    %74 = arith.mulf %9, %73 : vector<8x8x64xf32>
    %cst_39 = arith.constant dense<0.000000e+00> : vector<8x64xf32>
    %75 = vector.multi_reduction <add>, %74, %cst_39 [1] : vector<8x8x64xf32> to vector<8x64xf32>
    %76 = tpu.concatenate %75, %42, %5 in 1 : vector<8x64xf32>, vector<8x32xf32>, vector<8x32xf32> -> vector<8x128xf32>
    %c0_40 = arith.constant 0 : index
    %c0_41 = arith.constant 0 : index
    %77 = vector.load %arg14[%c0_40, %c0_41] : memref<128x128xf32, #tpu.memory_space<vmem>>, vector<128x128xf32>
    %cst_42 = arith.constant dense<0.000000e+00> : vector<8x128xf32>
    %78 = tpu.matmul %76, %77, %cst_42 {dimension_numbers = #tpu.dot_dimension_numbers<[1], [0], [0], [1], [0, 0, 1, 1], [], []>} : vector<8x128xf32>, vector<128x128xf32>, vector<8x128xf32> -> vector<8x128xf32>
    %c0_43 = arith.constant 0 : index
    %c0_44 = arith.constant 0 : index
    %79 = vector.load %arg15[%c0_43, %c0_44] : memref<1x128xf32, #tpu.memory_space<vmem>>, vector<1x128xf32>
    %80 = vector.broadcast %79 : vector<1x128xf32> to vector<8x128xf32>
    %81 = arith.addf %78, %80 : vector<8x128xf32>
    %82 = vector.extract_strided_slice %81 {offsets = [0, 0], sizes = [8, 32], strides = [1, 1]} : vector<8x128xf32> to vector<8x32xf32>
    %83 = arith.negf %82 : vector<8x32xf32>
    %84 = math.exp %83 : vector<8x32xf32>
    %cst_45 = arith.constant 1.000000e+00 : f32
    %85 = vector.broadcast %cst_45 : f32 to vector<8x32xf32>
    %86 = arith.addf %85, %84 : vector<8x32xf32>
    %87 = arith.divf %85, %86 : vector<8x32xf32>
    %88 = vector.extract_strided_slice %81 {offsets = [0, 32], sizes = [8, 32], strides = [1, 1]} : vector<8x128xf32> to vector<8x32xf32>
    %89 = arith.negf %88 : vector<8x32xf32>
    %90 = math.exp %89 : vector<8x32xf32>
    %cst_46 = arith.constant 1.000000e+00 : f32
    %91 = vector.broadcast %cst_46 : f32 to vector<8x32xf32>
    %92 = arith.addf %91, %90 : vector<8x32xf32>
    %93 = arith.divf %91, %92 : vector<8x32xf32>
    %94 = vector.extract_strided_slice %81 {offsets = [0, 64], sizes = [8, 32], strides = [1, 1]} : vector<8x128xf32> to vector<8x32xf32>
    %95 = math.tanh %94 : vector<8x32xf32>
    %96 = vector.extract_strided_slice %81 {offsets = [0, 96], sizes = [8, 32], strides = [1, 1]} : vector<8x128xf32> to vector<8x32xf32>
    %97 = arith.negf %96 : vector<8x32xf32>
    %98 = math.exp %97 : vector<8x32xf32>
    %cst_47 = arith.constant 1.000000e+00 : f32
    %99 = vector.broadcast %cst_47 : f32 to vector<8x32xf32>
    %100 = arith.addf %99, %98 : vector<8x32xf32>
    %101 = arith.divf %99, %100 : vector<8x32xf32>
    %102 = arith.mulf %93, %6 : vector<8x32xf32>
    %103 = arith.mulf %87, %95 : vector<8x32xf32>
    %104 = arith.addf %102, %103 : vector<8x32xf32>
    %105 = math.tanh %104 : vector<8x32xf32>
    %106 = arith.mulf %101, %105 : vector<8x32xf32>
    %c0_48 = arith.constant 0 : index
    %c0_49 = arith.constant 0 : index
    %107 = vector.load %arg16[%c0_48, %c0_49] : memref<32x128xf32, #tpu.memory_space<vmem>>, vector<32x128xf32>
    %cst_50 = arith.constant dense<0.000000e+00> : vector<8x128xf32>
    %108 = tpu.matmul %106, %107, %cst_50 {dimension_numbers = #tpu.dot_dimension_numbers<[1], [0], [0], [1], [0, 0, 1, 1], [], []>} : vector<8x32xf32>, vector<32x128xf32>, vector<8x128xf32> -> vector<8x128xf32>
    %c0_51 = arith.constant 0 : index
    %c0_52 = arith.constant 0 : index
    %109 = vector.load %arg17[%c0_51, %c0_52] : memref<1x128xf32, #tpu.memory_space<vmem>>, vector<1x128xf32>
    %110 = vector.broadcast %109 : vector<1x128xf32> to vector<8x128xf32>
    %111 = arith.addf %108, %110 : vector<8x128xf32>
    %112 = vector.shape_cast %12 : vector<8x1xi1> to vector<8x1xi1>
    %113 = vector.broadcast %112 : vector<8x1xi1> to vector<8x32xi1>
    %114 = arith.select %113, %42, %3 : vector<8x32xi1>, vector<8x32xf32>
    %c0_53 = arith.constant 0 : index
    %c0_54 = arith.constant 0 : index
    %115 = vector.load %arg20[%c0_53, %c0_54] : memref<8x32xf32, #tpu.memory_space<vmem>>, vector<8x32xf32>
    tpu.vector_store %arg20[%c0_53, %c0_54], %114 {strides = array<i32>} : memref<8x32xf32, #tpu.memory_space<vmem>>, vector<8x32xf32>,
    %116 = vector.shape_cast %12 : vector<8x1xi1> to vector<8x1xi1>
    %117 = vector.broadcast %116 : vector<8x1xi1> to vector<8x32xi1>
    %118 = arith.select %117, %40, %4 : vector<8x32xi1>, vector<8x32xf32>
    %c0_55 = arith.constant 0 : index
    %c0_56 = arith.constant 0 : index
    %119 = vector.load %arg21[%c0_55, %c0_56] : memref<8x32xf32, #tpu.memory_space<vmem>>, vector<8x32xf32>
    tpu.vector_store %arg21[%c0_55, %c0_56], %118 {strides = array<i32>} : memref<8x32xf32, #tpu.memory_space<vmem>>, vector<8x32xf32>,
    %120 = vector.shape_cast %12 : vector<8x1xi1> to vector<8x1xi1>
    %121 = vector.broadcast %120 : vector<8x1xi1> to vector<8x32xi1>
    %122 = arith.select %121, %106, %5 : vector<8x32xi1>, vector<8x32xf32>
    %c0_57 = arith.constant 0 : index
    %c0_58 = arith.constant 0 : index
    %123 = vector.load %arg22[%c0_57, %c0_58] : memref<8x32xf32, #tpu.memory_space<vmem>>, vector<8x32xf32>
    tpu.vector_store %arg22[%c0_57, %c0_58], %122 {strides = array<i32>} : memref<8x32xf32, #tpu.memory_space<vmem>>, vector<8x32xf32>,
    %124 = vector.shape_cast %12 : vector<8x1xi1> to vector<8x1xi1>
    %125 = vector.broadcast %124 : vector<8x1xi1> to vector<8x32xi1>
    %126 = arith.select %125, %104, %6 : vector<8x32xi1>, vector<8x32xf32>
    %c0_59 = arith.constant 0 : index
    %c0_60 = arith.constant 0 : index
    %127 = vector.load %arg23[%c0_59, %c0_60] : memref<8x32xf32, #tpu.memory_space<vmem>>, vector<8x32xf32>
    tpu.vector_store %arg23[%c0_59, %c0_60], %126 {strides = array<i32>} : memref<8x32xf32, #tpu.memory_space<vmem>>, vector<8x32xf32>,
    %cst_61 = arith.constant 0.000000e+00 : f32
    %128 = vector.shape_cast %12 : vector<8x1xi1> to vector<8x1xi1>
    %129 = vector.broadcast %128 : vector<8x1xi1> to vector<8x128xi1>
    %130 = vector.broadcast %cst_61 : f32 to vector<8x128xf32>
    %131 = arith.select %129, %111, %130 : vector<8x128xi1>, vector<8x128xf32>
    %c0_62 = arith.constant 0 : index
    %c0_63 = arith.constant 0 : index
    %c0_64 = arith.constant 0 : index
    %132 = vector.load %arg18[%c0_62, %c0_63, %c0_64] : memref<1x8x128xf32, #tpu.memory_space<vmem>>, vector<1x8x128xf32>
    %133 = vector.shape_cast %132 : vector<1x8x128xf32> to vector<8x128xf32>
    %134 = vector.shape_cast %131 : vector<8x128xf32> to vector<1x8x128xf32>
    tpu.vector_store %arg18[%c0_62, %c0_63, %c0_64], %134 {strides = array<i32>} : memref<1x8x128xf32, #tpu.memory_space<vmem>>, vector<1x8x128xf32>,
    %c0_65 = arith.constant 0 : index
    %c0_66 = arith.constant 0 : index
    %135 = vector.load %arg19[%c0_65, %c0_66] : memref<8x8xf32, #tpu.memory_space<vmem>>, vector<8x8xf32>
    tpu.vector_store %arg19[%c0_65, %c0_66], %71 {strides = array<i32>} : memref<8x8xf32, #tpu.memory_space<vmem>>, vector<8x8xf32>,
    return
  }
  func.func @transform_0(%arg0: i32) -> (i32, i32, i32) {
    %c0_i32 = arith.constant 0 : i32
    %c0_i32_0 = arith.constant 0 : i32
    %c0_i32_1 = arith.constant 0 : i32
    return %arg0, %c0_i32, %c0_i32_0 : i32, i32, i32
  }
  func.func @transform_1(%arg0: i32) -> (i32, i32) {
    %c0_i32 = arith.constant 0 : i32
    %c0_i32_0 = arith.constant 0 : i32
    %c0_i32_1 = arith.constant 0 : i32
    return %c0_i32, %c0_i32_0 : i32, i32
  }
  func.func @transform_2(%arg0: i32) -> (i32, i32, i32) {
    %c0_i32 = arith.constant 0 : i32
    %c0_i32_0 = arith.constant 0 : i32
    %c0_i32_1 = arith.constant 0 : i32
    %c0_i32_2 = arith.constant 0 : i32
    return %c0_i32, %c0_i32_0, %c0_i32_1 : i32, i32, i32
  }
  func.func @transform_3(%arg0: i32) -> (i32, i32) {
    %c0_i32 = arith.constant 0 : i32
    %c0_i32_0 = arith.constant 0 : i32
    %c0_i32_1 = arith.constant 0 : i32
    return %c0_i32, %c0_i32_0 : i32, i32
  }
  func.func @transform_4(%arg0: i32) -> (i32, i32) {
    %c0_i32 = arith.constant 0 : i32
    %c0_i32_0 = arith.constant 0 : i32
    %c0_i32_1 = arith.constant 0 : i32
    return %c0_i32, %c0_i32_0 : i32, i32
  }
  func.func @transform_5(%arg0: i32) -> (i32, i32) {
    %c0_i32 = arith.constant 0 : i32
    %c0_i32_0 = arith.constant 0 : i32
    %c0_i32_1 = arith.constant 0 : i32
    return %c0_i32, %c0_i32_0 : i32, i32
  }
  func.func @transform_6(%arg0: i32) -> (i32, i32) {
    %c0_i32 = arith.constant 0 : i32
    %c0_i32_0 = arith.constant 0 : i32
    %c0_i32_1 = arith.constant 0 : i32
    return %c0_i32, %c0_i32_0 : i32, i32
  }
  func.func @transform_7(%arg0: i32) -> (i32, i32) {
    %c0_i32 = arith.constant 0 : i32
    %c0_i32_0 = arith.constant 0 : i32
    %c0_i32_1 = arith.constant 0 : i32
    return %c0_i32, %c0_i32_0 : i32, i32
  }
  func.func @transform_8(%arg0: i32) -> (i32, i32) {
    %c0_i32 = arith.constant 0 : i32
    %c0_i32_0 = arith.constant 0 : i32
    %c0_i32_1 = arith.constant 0 : i32
    return %c0_i32, %c0_i32_0 : i32, i32
  }
  func.func @transform_9(%arg0: i32) -> (i32, i32) {
    %c0_i32 = arith.constant 0 : i32
    %c0_i32_0 = arith.constant 0 : i32
    %c0_i32_1 = arith.constant 0 : i32
    return %c0_i32, %c0_i32_0 : i32, i32
  }
  func.func @transform_10(%arg0: i32) -> (i32, i32) {
    %c0_i32 = arith.constant 0 : i32
    %c0_i32_0 = arith.constant 0 : i32
    %c0_i32_1 = arith.constant 0 : i32
    return %c0_i32, %c0_i32_0 : i32, i32
  }
  func.func @transform_11(%arg0: i32) -> (i32, i32) {
    %c0_i32 = arith.constant 0 : i32
    %c0_i32_0 = arith.constant 0 : i32
    %c0_i32_1 = arith.constant 0 : i32
    return %c0_i32, %c0_i32_0 : i32, i32
  }
  func.func @transform_12(%arg0: i32) -> (i32, i32) {
    %c0_i32 = arith.constant 0 : i32
    %c0_i32_0 = arith.constant 0 : i32
    %c0_i32_1 = arith.constant 0 : i32
    return %c0_i32, %c0_i32_0 : i32, i32
  }
  func.func @transform_13(%arg0: i32) -> (i32, i32) {
    %c0_i32 = arith.constant 0 : i32
    %c0_i32_0 = arith.constant 0 : i32
    %c0_i32_1 = arith.constant 0 : i32
    return %c0_i32, %c0_i32_0 : i32, i32
  }
  func.func @transform_14(%arg0: i32) -> (i32, i32) {
    %c0_i32 = arith.constant 0 : i32
    %c0_i32_0 = arith.constant 0 : i32
    %c0_i32_1 = arith.constant 0 : i32
    return %c0_i32, %c0_i32_0 : i32, i32
  }
  func.func @transform_15(%arg0: i32) -> (i32, i32) {
    %c0_i32 = arith.constant 0 : i32
    %c0_i32_0 = arith.constant 0 : i32
    %c0_i32_1 = arith.constant 0 : i32
    return %c0_i32, %c0_i32_0 : i32, i32
  }
  func.func @transform_16(%arg0: i32) -> (i32, i32) {
    %c0_i32 = arith.constant 0 : i32
    %c0_i32_0 = arith.constant 0 : i32
    %c0_i32_1 = arith.constant 0 : i32
    return %c0_i32, %c0_i32_0 : i32, i32
  }
  func.func @transform_17(%arg0: i32) -> (i32, i32, i32) {
    %c0_i32 = arith.constant 0 : i32
    %c0_i32_0 = arith.constant 0 : i32
    %c0_i32_1 = arith.constant 0 : i32
    return %arg0, %c0_i32, %c0_i32_0 : i32, i32, i32
  }
  func.func @transform_18(%arg0: i32) -> (i32, i32) {
    %c0_i32 = arith.constant 0 : i32
    %c0_i32_0 = arith.constant 0 : i32
    %c0_i32_1 = arith.constant 0 : i32
    return %c0_i32, %c0_i32_0 : i32, i32
  }
}

</mosaic_0001>

<llo_original>
// kernel: tpu_custom_call.1
$region0: #{tpu_custom_call.1}
  #allocation0 [shape = 'u32[]', space=smem, size = 0x4, offset = 0x4, fixed_abs, tag = 'smem constant byte address 0x4 - core index']
  #allocation1 [shape = 'u32[72,128]{1,0:T(1,128)}', space=vmem, size = 0x9000, scoped, tag = 'internal scratch']
  #allocation2 [shape = 'f32[8,32]{1,0:T(8,128)}', space=vmem, size = 0x1000, scoped, tag = 'scratch operand']
  #allocation3 [shape = 'f32[8,32]{1,0:T(8,128)}', space=vmem, size = 0x1000, scoped, tag = 'scratch operand']
  #allocation4 [shape = 'f32[8,32]{1,0:T(8,128)}', space=vmem, size = 0x1000, scoped, tag = 'scratch operand']
  #allocation5 [shape = 'f32[8,32]{1,0:T(8,128)}', space=vmem, size = 0x1000, scoped, tag = 'scratch operand']
  #allocation6 [shape = 'f32[8,8,32]{2,1,0:T(8,128)}', space=vmem, size = 0x8000, scoped, tag = 'scratch operand']
  #allocation7 [shape = 'f32[8,128]{1,0:T(8,128)}', space=vmem, size = 0x1000, scoped, tag = 'scratch operand']
  #allocation8 [shape = 'f32[1,1]{1,0:T(1,128)S(1)}', space=vmem, size = 0x200, scoped, tag = 'scoped memory for tpu_custom_call.1']
  %s0 = inlined_call_operand.hbm [shape: f32[4,8,16], index: 0, kind: input, shape index: {}]
  %s1 = inlined_call_operand.hbm [shape: f32[8,64], index: 1, kind: input, shape index: {}]
  %s2 = inlined_call_operand.hbm [shape: f32[8,8,64], index: 2, kind: input, shape index: {}]
  %s3 = inlined_call_operand.vmem [shape: s32[8,1], index: 3, kind: input, shape index: {}]
  %s4 = inlined_call_operand.hbm [shape: f32[64,128], index: 4, kind: input, shape index: {}]
  %s5 = inlined_call_operand.vmem [shape: f32[80,128], index: 5, kind: input, shape index: {}]
  %s6 = inlined_call_operand.hbm [shape: f32[1,128], index: 6, kind: input, shape index: {}]
  %s7 = inlined_call_operand.vmem [shape: f32[64,32], index: 7, kind: input, shape index: {}]
  %s8 = inlined_call_operand.vmem [shape: f32[1,32], index: 8, kind: input, shape index: {}]
  %s9 = inlined_call_operand.vmem [shape: f32[32,32], index: 9, kind: input, shape index: {}]
  %s10 = inlined_call_operand.vmem [shape: f32[1,32], index: 10, kind: input, shape index: {}]
  %s11 = inlined_call_operand.vmem [shape: f32[1,32], index: 11, kind: input, shape index: {}]
  %s12 = inlined_call_operand.<no memory space> [shape: f32[1,1], index: 12, kind: input, shape index: {}]
  %s13 = inlined_call_operand.hbm [shape: f32[128,128], index: 13, kind: input, shape index: {}]
  %s14 = inlined_call_operand.vmem [shape: f32[1,128], index: 14, kind: input, shape index: {}]
  %s15 = inlined_call_operand.hbm [shape: f32[32,128], index: 15, kind: input, shape index: {}]
  %s16 = inlined_call_operand.vmem [shape: f32[1,128], index: 16, kind: input, shape index: {}]
  %s17 = inlined_call_operand.hbm [shape: f32[4,8,128], index: 17, kind: output, shape index: {0}]
  %s18 = inlined_call_operand.hbm [shape: f32[8,8], index: 18, kind: output, shape index: {1}]
  %19 = xla_tuple %s17, %s18
  %s20 = sld [smem:[#allocation0]]
  $region141: #{tpu_custom_call.1} parent=0
    _
  %s22 = ssub.s32 1, %s20
  %s23 = scalar_select 0, %s22, %s20
  %v24 = vstv %s12
  %25 = vst [vmem:[#allocation8] sm:$0x1] %v24
  $region1: #{tpu_custom_call.1} parent=0
    #allocation9 [shape = 'u8[8192]{0}', space=vmem, size = 0x2000, scoped, tag = 'input window, operand 0']
    #allocation10 [shape = 's32[2]{0}', space=sflag, size = 0x8, scoped, tag = 'scoped memory for tpu_custom_call.1']
    #allocation11 [shape = 's32[2]{0}', space=sflag, size = 0x8, scoped, tag = 'scoped memory for tpu_custom_call.1']
    #allocation12 [shape = 'u8[4096]{0}', space=vmem, size = 0x1000, scoped, tag = 'input window, operand 1, single buffered']
    #allocation13 [shape = 's32[1]{0}', space=sflag, size = 0x4, scoped, tag = 'scoped memory for tpu_custom_call.1']
    #allocation14 [shape = 'u8[32768]{0}', space=vmem, size = 0x8000, scoped, tag = 'input window, operand 2, single buffered']
    #allocation15 [shape = 'u8[32768]{0}', space=vmem, size = 0x8000, scoped, tag = 'input window, operand 4, single buffered']
    #allocation16 [shape = 's32[1]{0}', space=sflag, size = 0x4, scoped, tag = 'scoped memory for tpu_custom_call.1']
    #allocation17 [shape = 'u8[512]{0}', space=vmem, size = 0x400, scoped, tag = 'input window, operand 6, single buffered']
    #allocation18 [shape = 'u8[65536]{0}', space=vmem, size = 0x10000, scoped, tag = 'input window, operand 13, single buffered']
    #allocation19 [shape = 's32[1]{0}', space=sflag, size = 0x4, scoped, tag = 'scoped memory for tpu_custom_call.1']
    #allocation20 [shape = 'u8[16384]{0}', space=vmem, size = 0x4000, scoped, tag = 'input window, operand 15, single buffered']
    #allocation21 [shape = 'u8[8192]{0}', space=vmem, size = 0x2000, scoped, tag = 'output window, operand 0']
    #allocation22 [shape = 'u8[4096]{0}', space=vmem, size = 0x1000, scoped, tag = 'output window, operand 1, single buffered']
    #allocation23 [shape = 's32[1]{0}', space=sflag, size = 0x4, scoped, tag = 'scoped memory for tpu_custom_call.1']
    %26 = vsyncpa [#allocation10], 0
    %s27 = scalar_lea.sflag [#allocation10], 1
    %28 = vsyncpa %s27, 0
    %29 = vsyncpa [#allocation13], 0
    %30 = vsyncpa [#allocation16], 0
    %31 = vsyncpa [#allocation19], 0
    %32 = vsyncpa [#allocation11], 0
    %s33 = scalar_lea.sflag [#allocation11], 1
    %34 = vsyncpa %s33, 0
    %35 = vsyncpa [#allocation23], 0
    loop: start=0, step=1, limit=6
    $region2: #{tpu_custom_call.1} parent=1 // loop_pre_header
      _
    $region3: #{tpu_custom_call.1} parent=1 // loop_header
      %s37 = sphi 0, %s41
      %p38 = scmp.ge.s32.totalorder %s37, 6
      %s47 = sphi 0, %s49
      %s50 = sphi 0, %s47
      %s51 = sphi 0, %s50
      %s67 = sphi 0, %s51
      %s71 = sphi 0, %s71
      %s73 = sphi 0, %s71
      %s74 = sphi 0, %s73
      %s88 = sphi 0, %s74
      %s92 = sphi 0, %s92
      %s94 = sphi 0, %s92
      %s95 = sphi 0, %s94
      %s109 = sphi 0, %s95
      %s113 = sphi 0, %s113
      %s115 = sphi 0, %s113
      %s116 = sphi 0, %s115
      %s130 = sphi 0, %s116
      %s134 = sphi 0, %s134
      %s136 = sphi 0, %s134
      %s137 = sphi 0, %s136
      %s151 = sphi 0, %s137
      %s155 = sphi 0, %s155
      %s157 = sphi 0, %s155
      %s158 = sphi 0, %s157
      %s172 = sphi 0, %s158
      %s176 = sphi 0, %s176
      %s178 = sphi 0, %s176
      %s179 = sphi 0, %s178
      %s193 = sphi 0, %s179
      %s197 = sphi 0, %s197
      %s199 = sphi 0, %s197
      %s200 = sphi 0, %s199
      %s214 = sphi 0, %s200
      %s218 = sphi 0, %s218
      %s220 = sphi 0, %s218
      %s221 = sphi 0, %s220
      %s235 = sphi 0, %s221
      %s239 = sphi 0, %s239
      %s241 = sphi 0, %s239
      %s242 = sphi 0, %s241
      %s256 = sphi 0, %s242
      %s260 = sphi 0, %s260
      %s262 = sphi 0, %s260
      %s263 = sphi 0, %s262
      %s277 = sphi 0, %s263
      %s281 = sphi 0, %s281
      %s283 = sphi 0, %s281
      %s284 = sphi 0, %s283
      %s298 = sphi 0, %s284
      %s302 = sphi 0, %s302
      %s304 = sphi 0, %s302
      %s305 = sphi 0, %s304
      %s319 = sphi 0, %s305
      %s323 = sphi 0, %s323
      %s325 = sphi 0, %s323
      %s326 = sphi 0, %s325
      %s340 = sphi 0, %s326
      %s344 = sphi 0, %s344
      %s346 = sphi 0, %s344
      %s347 = sphi 0, %s346
      %s361 = sphi 0, %s347
      %s365 = sphi 0, %s365
      %s367 = sphi 0, %s365
      %s368 = sphi 0, %s367
      %s382 = sphi 0, %s368
      %s386 = sphi 0, %s386
      %s388 = sphi 0, %s386
      %s389 = sphi 0, %s388
      %s403 = sphi 0, %s389
      %s409 = sphi 0, %s411
      %s412 = sphi 0, %s409
      %s413 = sphi 0, %s412
      %s429 = sphi 0, %s413
      %s433 = sphi 0, %s433
      %s435 = sphi 0, %s433
      %s436 = sphi 0, %s435
      %s450 = sphi 0, %s436
    $region4: #{tpu_custom_call.1} parent=1 // loop_header_branch
      %40 = sbr.rel (%p38) target = $region8
    $region5: #{tpu_custom_call.1} parent=1 // loop_body
      %s42 = ssub.s32 %s37, 1
      %s43 = ssub.s32 %s37, 2
      %s44 = sadd.s32 %s37, 1
      %s45 = ssub.s32 %s37, %s44
      %p46 = scmp.eq.s32.totalorder %s45, 0
      %s48 = sadd.s32 %s47, 1
      %s49 = scalar_select %p46, %s47, %s48
      %p52 = pneg %p46
      %p53 = scmp.eq.s32.totalorder %s37, 3
      %p54 = por %p52, %p53
      %p55 = scmp.ne.s32.totalorder %s47, %s50
      %p56 = scmp.eq.s32.totalorder %s37, 0
      %p57 = por %p55, %p56
      %p58 = scmp.ne.s32.totalorder %s47, %s50
      %p59 = scmp.eq.s32.totalorder %s42, 3
      %p60 = por %p58, %p59
      %p61 = scmp.ne.s32.totalorder %s50, %s51
      %p62 = scmp.eq.s32.totalorder %s42, 0
      %p63 = por %p61, %p62
      %p64 = scmp.ne.s32.totalorder %s50, %s51
      %p65 = scmp.eq.s32.totalorder %s43, 3
      %p66 = por %p64, %p65
      %p68 = scmp.ne.s32.totalorder %s51, %s67
      %p69 = scmp.eq.s32.totalorder %s43, 0
      %p70 = por %p68, %p69
      %s72 = sadd.s32 %s71, 1
      %p75 = scmp.eq.s32.totalorder %s37, 3
      %p76 = scmp.ne.s32.totalorder %s71, %s73
      %p77 = scmp.eq.s32.totalorder %s37, 0
      %p78 = por %p76, %p77
      %p79 = scmp.ne.s32.totalorder %s71, %s73
      %p80 = scmp.eq.s32.totalorder %s42, 3
      %p81 = por %p79, %p80
      %p82 = scmp.ne.s32.totalorder %s73, %s74
      %p83 = scmp.eq.s32.totalorder %s42, 0
      %p84 = por %p82, %p83
      %p85 = scmp.ne.s32.totalorder %s73, %s74
      %p86 = scmp.eq.s32.totalorder %s43, 3
      %p87 = por %p85, %p86
      %p89 = scmp.ne.s32.totalorder %s74, %s88
      %p90 = scmp.eq.s32.totalorder %s43, 0
      %p91 = por %p89, %p90
      %s93 = sadd.s32 %s92, 1
      %p96 = scmp.eq.s32.totalorder %s37, 3
      %p97 = scmp.ne.s32.totalorder %s92, %s94
      %p98 = scmp.eq.s32.totalorder %s37, 0
      %p99 = por %p97, %p98
      %p100 = scmp.ne.s32.totalorder %s92, %s94
      %p101 = scmp.eq.s32.totalorder %s42, 3
      %p102 = por %p100, %p101
      %p103 = scmp.ne.s32.totalorder %s94, %s95
      %p104 = scmp.eq.s32.totalorder %s42, 0
      %p105 = por %p103, %p104
      %p106 = scmp.ne.s32.totalorder %s94, %s95
      %p107 = scmp.eq.s32.totalorder %s43, 3
      %p108 = por %p106, %p107
      %p110 = scmp.ne.s32.totalorder %s95, %s109
      %p111 = scmp.eq.s32.totalorder %s43, 0
      %p112 = por %p110, %p111
      %s114 = sadd.s32 %s113, 1
      %p117 = scmp.eq.s32.totalorder %s37, 3
      %p118 = scmp.ne.s32.totalorder %s113, %s115
      %p119 = scmp.eq.s32.totalorder %s37, 0
      %p120 = por %p118, %p119
      %p121 = scmp.ne.s32.totalorder %s113, %s115
      %p122 = scmp.eq.s32.totalorder %s42, 3
      %p123 = por %p121, %p122
      %p124 = scmp.ne.s32.totalorder %s115, %s116
      %p125 = scmp.eq.s32.totalorder %s42, 0
      %p126 = por %p124, %p125
      %p127 = scmp.ne.s32.totalorder %s115, %s116
      %p128 = scmp.eq.s32.totalorder %s43, 3
      %p129 = por %p127, %p128
      %p131 = scmp.ne.s32.totalorder %s116, %s130
      %p132 = scmp.eq.s32.totalorder %s43, 0
      %p133 = por %p131, %p132
      %s135 = sadd.s32 %s134, 1
      %p138 = scmp.eq.s32.totalorder %s37, 3
      %p139 = scmp.ne.s32.totalorder %s134, %s136
      %p140 = scmp.eq.s32.totalorder %s37, 0
      %p141 = por %p139, %p140
      %p142 = scmp.ne.s32.totalorder %s134, %s136
      %p143 = scmp.eq.s32.totalorder %s42, 3
      %p144 = por %p142, %p143
      %p145 = scmp.ne.s32.totalorder %s136, %s137
      %p146 = scmp.eq.s32.totalorder %s42, 0
      %p147 = por %p145, %p146
      %p148 = scmp.ne.s32.totalorder %s136, %s137
      %p149 = scmp.eq.s32.totalorder %s43, 3
      %p150 = por %p148, %p149
      %p152 = scmp.ne.s32.totalorder %s137, %s151
      %p153 = scmp.eq.s32.totalorder %s43, 0
      %p154 = por %p152, %p153
      %s156 = sadd.s32 %s155, 1
      %p159 = scmp.eq.s32.totalorder %s37, 3
      %p160 = scmp.ne.s32.totalorder %s155, %s157
      %p161 = scmp.eq.s32.totalorder %s37, 0
      %p162 = por %p160, %p161
      %p163 = scmp.ne.s32.totalorder %s155, %s157
      %p164 = scmp.eq.s32.totalorder %s42, 3
      %p165 = por %p163, %p164
      %p166 = scmp.ne.s32.totalorder %s157, %s158
      %p167 = scmp.eq.s32.totalorder %s42, 0
      %p168 = por %p166, %p167
      %p169 = scmp.ne.s32.totalorder %s157, %s158
      %p170 = scmp.eq.s32.totalorder %s43, 3
      %p171 = por %p169, %p170
      %p173 = scmp.ne.s32.totalorder %s158, %s172
      %p174 = scmp.eq.s32.totalorder %s43, 0
      %p175 = por %p173, %p174
      %s177 = sadd.s32 %s176, 1
      %p180 = scmp.eq.s32.totalorder %s37, 3
      %p181 = scmp.ne.s32.totalorder %s176, %s178
      %p182 = scmp.eq.s32.totalorder %s37, 0
      %p183 = por %p181, %p182
      %p184 = scmp.ne.s32.totalorder %s176, %s178
      %p185 = scmp.eq.s32.totalorder %s42, 3
      %p186 = por %p184, %p185
      %p187 = scmp.ne.s32.totalorder %s178, %s179
      %p188 = scmp.eq.s32.totalorder %s42, 0
      %p189 = por %p187, %p188
      %p190 = scmp.ne.s32.totalorder %s178, %s179
      %p191 = scmp.eq.s32.totalorder %s43, 3
      %p192 = por %p190, %p191
      %p194 = scmp.ne.s32.totalorder %s179, %s193
      %p195 = scmp.eq.s32.totalorder %s43, 0
      %p196 = por %p194, %p195
      %s198 = sadd.s32 %s197, 1
      %p201 = scmp.eq.s32.totalorder %s37, 3
      %p202 = scmp.ne.s32.totalorder %s197, %s199
      %p203 = scmp.eq.s32.totalorder %s37, 0
      %p204 = por %p202, %p203
      %p205 = scmp.ne.s32.totalorder %s197, %s199
      %p206 = scmp.eq.s32.totalorder %s42, 3
      %p207 = por %p205, %p206
      %p208 = scmp.ne.s32.totalorder %s199, %s200
      %p209 = scmp.eq.s32.totalorder %s42, 0
      %p210 = por %p208, %p209
      %p211 = scmp.ne.s32.totalorder %s199, %s200
      %p212 = scmp.eq.s32.totalorder %s43, 3
      %p213 = por %p211, %p212
      %p215 = scmp.ne.s32.totalorder %s200, %s214
      %p216 = scmp.eq.s32.totalorder %s43, 0
      %p217 = por %p215, %p216
      %s219 = sadd.s32 %s218, 1
      %p222 = scmp.eq.s32.totalorder %s37, 3
      %p223 = scmp.ne.s32.totalorder %s218, %s220
      %p224 = scmp.eq.s32.totalorder %s37, 0
      %p225 = por %p223, %p224
      %p226 = scmp.ne.s32.totalorder %s218, %s220
      %p227 = scmp.eq.s32.totalorder %s42, 3
      %p228 = por %p226, %p227
      %p229 = scmp.ne.s32.totalorder %s220, %s221
      %p230 = scmp.eq.s32.totalorder %s42, 0
      %p231 = por %p229, %p230
      %p232 = scmp.ne.s32.totalorder %s220, %s221
      %p233 = scmp.eq.s32.totalorder %s43, 3
      %p234 = por %p232, %p233
      %p236 = scmp.ne.s32.totalorder %s221, %s235
      %p237 = scmp.eq.s32.totalorder %s43, 0
      %p238 = por %p236, %p237
      %s240 = sadd.s32 %s239, 1
      %p243 = scmp.eq.s32.totalorder %s37, 3
      %p244 = scmp.ne.s32.totalorder %s239, %s241
      %p245 = scmp.eq.s32.totalorder %s37, 0
      %p246 = por %p244, %p245
      %p247 = scmp.ne.s32.totalorder %s239, %s241
      %p248 = scmp.eq.s32.totalorder %s42, 3
      %p249 = por %p247, %p248
      %p250 = scmp.ne.s32.totalorder %s241, %s242
      %p251 = scmp.eq.s32.totalorder %s42, 0
      %p252 = por %p250, %p251
      %p253 = scmp.ne.s32.totalorder %s241, %s242
      %p254 = scmp.eq.s32.totalorder %s43, 3
      %p255 = por %p253, %p254
      %p257 = scmp.ne.s32.totalorder %s242, %s256
      %p258 = scmp.eq.s32.totalorder %s43, 0
      %p259 = por %p257, %p258
      %s261 = sadd.s32 %s260, 1
      %p264 = scmp.eq.s32.totalorder %s37, 3
      %p265 = scmp.ne.s32.totalorder %s260, %s262
      %p266 = scmp.eq.s32.totalorder %s37, 0
      %p267 = por %p265, %p266
      %p268 = scmp.ne.s32.totalorder %s260, %s262
      %p269 = scmp.eq.s32.totalorder %s42, 3
      %p270 = por %p268, %p269
      %p271 = scmp.ne.s32.totalorder %s262, %s263
      %p272 = scmp.eq.s32.totalorder %s42, 0
      %p273 = por %p271, %p272
      %p274 = scmp.ne.s32.totalorder %s262, %s263
      %p275 = scmp.eq.s32.totalorder %s43, 3
      %p276 = por %p274, %p275
      %p278 = scmp.ne.s32.totalorder %s263, %s277
      %p279 = scmp.eq.s32.totalorder %s43, 0
      %p280 = por %p278, %p279
      %s282 = sadd.s32 %s281, 1
      %p285 = scmp.eq.s32.totalorder %s37, 3
      %p286 = scmp.ne.s32.totalorder %s281, %s283
      %p287 = scmp.eq.s32.totalorder %s37, 0
      %p288 = por %p286, %p287
      %p289 = scmp.ne.s32.totalorder %s281, %s283
      %p290 = scmp.eq.s32.totalorder %s42, 3
      %p291 = por %p289, %p290
      %p292 = scmp.ne.s32.totalorder %s283, %s284
      %p293 = scmp.eq.s32.totalorder %s42, 0
      %p294 = por %p292, %p293
      %p295 = scmp.ne.s32.totalorder %s283, %s284
      %p296 = scmp.eq.s32.totalorder %s43, 3
      %p297 = por %p295, %p296
      %p299 = scmp.ne.s32.totalorder %s284, %s298
      %p300 = scmp.eq.s32.totalorder %s43, 0
      %p301 = por %p299, %p300
      %s303 = sadd.s32 %s302, 1
      %p306 = scmp.eq.s32.totalorder %s37, 3
      %p307 = scmp.ne.s32.totalorder %s302, %s304
      %p308 = scmp.eq.s32.totalorder %s37, 0
      %p309 = por %p307, %p308
      %p310 = scmp.ne.s32.totalorder %s302, %s304
      %p311 = scmp.eq.s32.totalorder %s42, 3
      %p312 = por %p310, %p311
      %p313 = scmp.ne.s32.totalorder %s304, %s305
      %p314 = scmp.eq.s32.totalorder %s42, 0
      %p315 = por %p313, %p314
      %p316 = scmp.ne.s32.totalorder %s304, %s305
      %p317 = scmp.eq.s32.totalorder %s43, 3
      %p318 = por %p316, %p317
      %p320 = scmp.ne.s32.totalorder %s305, %s319
      %p321 = scmp.eq.s32.totalorder %s43, 0
      %p322 = por %p320, %p321
      %s324 = sadd.s32 %s323, 1
      %p327 = scmp.eq.s32.totalorder %s37, 3
      %p328 = scmp.ne.s32.totalorder %s323, %s325
      %p329 = scmp.eq.s32.totalorder %s37, 0
      %p330 = por %p328, %p329
      %p331 = scmp.ne.s32.totalorder %s323, %s325
      %p332 = scmp.eq.s32.totalorder %s42, 3
      %p333 = por %p331, %p332
      %p334 = scmp.ne.s32.totalorder %s325, %s326
      %p335 = scmp.eq.s32.totalorder %s42, 0
      %p336 = por %p334, %p335
      %p337 = scmp.ne.s32.totalorder %s325, %s326
      %p338 = scmp.eq.s32.totalorder %s43, 3
      %p339 = por %p337, %p338
      %p341 = scmp.ne.s32.totalorder %s326, %s340
      %p342 = scmp.eq.s32.totalorder %s43, 0
      %p343 = por %p341, %p342
      %s345 = sadd.s32 %s344, 1
      %p348 = scmp.eq.s32.totalorder %s37, 3
      %p349 = scmp.ne.s32.totalorder %s344, %s346
      %p350 = scmp.eq.s32.totalorder %s37, 0
      %p351 = por %p349, %p350
      %p352 = scmp.ne.s32.totalorder %s344, %s346
      %p353 = scmp.eq.s32.totalorder %s42, 3
      %p354 = por %p352, %p353
      %p355 = scmp.ne.s32.totalorder %s346, %s347
      %p356 = scmp.eq.s32.totalorder %s42, 0
      %p357 = por %p355, %p356
      %p358 = scmp.ne.s32.totalorder %s346, %s347
      %p359 = scmp.eq.s32.totalorder %s43, 3
      %p360 = por %p358, %p359
      %p362 = scmp.ne.s32.totalorder %s347, %s361
      %p363 = scmp.eq.s32.totalorder %s43, 0
      %p364 = por %p362, %p363
      %s366 = sadd.s32 %s365, 1
      %p369 = scmp.eq.s32.totalorder %s37, 3
      %p370 = scmp.ne.s32.totalorder %s365, %s367
      %p371 = scmp.eq.s32.totalorder %s37, 0
      %p372 = por %p370, %p371
      %p373 = scmp.ne.s32.totalorder %s365, %s367
      %p374 = scmp.eq.s32.totalorder %s42, 3
      %p375 = por %p373, %p374
      %p376 = scmp.ne.s32.totalorder %s367, %s368
      %p377 = scmp.eq.s32.totalorder %s42, 0
      %p378 = por %p376, %p377
      %p379 = scmp.ne.s32.totalorder %s367, %s368
      %p380 = scmp.eq.s32.totalorder %s43, 3
      %p381 = por %p379, %p380
      %p383 = scmp.ne.s32.totalorder %s368, %s382
      %p384 = scmp.eq.s32.totalorder %s43, 0
      %p385 = por %p383, %p384
      %s387 = sadd.s32 %s386, 1
      %p390 = scmp.eq.s32.totalorder %s37, 3
      %p391 = scmp.ne.s32.totalorder %s386, %s388
      %p392 = scmp.eq.s32.totalorder %s37, 0
      %p393 = por %p391, %p392
      %p394 = scmp.ne.s32.totalorder %s386, %s388
      %p395 = scmp.eq.s32.totalorder %s42, 3
      %p396 = por %p394, %p395
      %p397 = scmp.ne.s32.totalorder %s388, %s389
      %p398 = scmp.eq.s32.totalorder %s42, 0
      %p399 = por %p397, %p398
      %p400 = scmp.ne.s32.totalorder %s388, %s389
      %p401 = scmp.eq.s32.totalorder %s43, 3
      %p402 = por %p400, %p401
      %p404 = scmp.ne.s32.totalorder %s389, %s403
      %p405 = scmp.eq.s32.totalorder %s43, 0
      %p406 = por %p404, %p405
      %s407 = ssub.s32 %s37, %s44
      %p408 = scmp.eq.s32.totalorder %s407, 0
      %s410 = sadd.s32 %s409, 1
      %s411 = scalar_select %p408, %s409, %s410
      %p414 = pneg %p408
      %p415 = scmp.eq.s32.totalorder %s37, 3
      %p416 = por %p414, %p415
      %p417 = scmp.ne.s32.totalorder %s409, %s412
      %p418 = scmp.eq.s32.totalorder %s37, 0
      %p419 = por %p417, %p418
      %p420 = scmp.ne.s32.totalorder %s409, %s412
      %p421 = scmp.eq.s32.totalorder %s42, 3
      %p422 = por %p420, %p421
      %p423 = scmp.ne.s32.totalorder %s412, %s413
      %p424 = scmp.eq.s32.totalorder %s42, 0
      %p425 = por %p423, %p424
      %p426 = scmp.ne.s32.totalorder %s412, %s413
      %p427 = scmp.eq.s32.totalorder %s43, 3
      %p428 = por %p426, %p427
      %p430 = scmp.ne.s32.totalorder %s413, %s429
      %p431 = scmp.eq.s32.totalorder %s43, 0
      %p432 = por %p430, %p431
      %s434 = sadd.s32 %s433, 1
      %p437 = scmp.eq.s32.totalorder %s37, 3
      %p438 = scmp.ne.s32.totalorder %s433, %s435
      %p439 = scmp.eq.s32.totalorder %s37, 0
      %p440 = por %p438, %p439
      %p441 = scmp.ne.s32.totalorder %s433, %s435
      %p442 = scmp.eq.s32.totalorder %s42, 3
      %p443 = por %p441, %p442
      %p444 = scmp.ne.s32.totalorder %s435, %s436
      %p445 = scmp.eq.s32.totalorder %s42, 0
      %p446 = por %p444, %p445
      %p447 = scmp.ne.s32.totalorder %s435, %s436
      %p448 = scmp.eq.s32.totalorder %s43, 3
      %p449 = por %p447, %p448
      %p451 = scmp.ne.s32.totalorder %s436, %s450
      %p452 = scmp.eq.s32.totalorder %s43, 0
      %p453 = por %p451, %p452
      %p454 = scmp.le.s32.totalorder 1, %s37
      %p455 = scmp.lt.s32.totalorder %s37, 5
      %p456 = pnand %p454, %p455
      %p457 = pneg %p456
      // Predicated region
      $region9: #{tpu_custom_call.1} parent=5 // pred_check
        _
      $region10: #{tpu_custom_call.1} parent=5 // pred_check_branch
        %459 = sbr.rel (%p456) target = $region12
      $region11: #{tpu_custom_call.1} parent=5 // pred_region
        %s460 = ssub.s32 %s37, 1
        // Predicated region
        $region13: #{tpu_custom_call.1} parent=11 // pred_check
          %p461 = pneg %p84
        $region14: #{tpu_custom_call.1} parent=11 // pred_check_branch
          %463 = sbr.rel (%p461) target = $region16
        $region15: #{tpu_custom_call.1} parent=11 // pred_region
          %465 = vsyncadd [#allocation13], 0
          %s467 = sshll.u32 %s1, 4
          %s468 = int_to_ptr.hbm [resolvable:$true] %s467
          %s469 = sshll.u32 [#allocation12], 4
          %s470 = int_to_ptr.vmem [resolvable:$true] %s469
          %472 = dma.hbm_to_vmem [thread:$0]  %s468, 128, %s470, [#allocation13]
        $region16: #{tpu_custom_call.1} parent=11 // pred_fallthru
          _
        // Predicated region
        $region17: #{tpu_custom_call.1} parent=11 // pred_check
          %p473 = pneg %p105
        $region18: #{tpu_custom_call.1} parent=11 // pred_check_branch
          %475 = sbr.rel (%p473) target = $region20
        $region19: #{tpu_custom_call.1} parent=11 // pred_region
          %477 = vsyncadd [#allocation13], 0
          %s478 = sshll.u32 %s2, 4
          %s479 = int_to_ptr.hbm [resolvable:$true] %s478
          %s480 = sshll.u32 [#allocation14], 4
          %s481 = int_to_ptr.vmem [resolvable:$true] %s480
          %486 = dma.hbm_to_vmem [thread:$0]  %s479, 1024, %s481, [#allocation13], 128, 128, 8
        $region20: #{tpu_custom_call.1} parent=11 // pred_fallthru
          _
        // Predicated region
        $region21: #{tpu_custom_call.1} parent=11 // pred_check
          %p487 = pneg %p126
        $region22: #{tpu_custom_call.1} parent=11 // pred_check_branch
          %489 = sbr.rel (%p487) target = $region24
        $region23: #{tpu_custom_call.1} parent=11 // pred_region
          _
        $region24: #{tpu_custom_call.1} parent=11 // pred_fallthru
          _
        // Predicated region
        $region25: #{tpu_custom_call.1} parent=11 // pred_check
          %p490 = pneg %p147
        $region26: #{tpu_custom_call.1} parent=11 // pred_check_branch
          %492 = sbr.rel (%p490) target = $region28
        $region27: #{tpu_custom_call.1} parent=11 // pred_region
          %494 = vsyncadd [#allocation16], 0
          %s495 = sshll.u32 %s4, 4
          %s496 = int_to_ptr.hbm [resolvable:$true] %s495
          %s497 = sshll.u32 [#allocation15], 4
          %s498 = int_to_ptr.vmem [resolvable:$true] %s497
          %503 = dma.hbm_to_vmem [thread:$0]  %s496, 1024, %s498, [#allocation16], 128, 128, 8
        $region28: #{tpu_custom_call.1} parent=11 // pred_fallthru
          _
        // Predicated region
        $region29: #{tpu_custom_call.1} parent=11 // pred_check
          %p504 = pneg %p168
        $region30: #{tpu_custom_call.1} parent=11 // pred_check_branch
          %506 = sbr.rel (%p504) target = $region32
        $region31: #{tpu_custom_call.1} parent=11 // pred_region
          _
        $region32: #{tpu_custom_call.1} parent=11 // pred_fallthru
          _
        // Predicated region
        $region33: #{tpu_custom_call.1} parent=11 // pred_check
          %p507 = pneg %p189
        $region34: #{tpu_custom_call.1} parent=11 // pred_check_branch
          %509 = sbr.rel (%p507) target = $region36
        $region35: #{tpu_custom_call.1} parent=11 // pred_region
          %511 = vsyncadd [#allocation16], 0
          %s513 = sshll.u32 %s6, 4
          %s514 = int_to_ptr.hbm [resolvable:$true] %s513
          %s515 = sshll.u32 [#allocation17], 4
          %s516 = int_to_ptr.vmem [resolvable:$true] %s515
          %518 = dma.hbm_to_vmem [thread:$0]  %s514, 16, %s516, [#allocation16]
        $region36: #{tpu_custom_call.1} parent=11 // pred_fallthru
          _
        // Predicated region
        $region37: #{tpu_custom_call.1} parent=11 // pred_check
          %p519 = pneg %p210
        $region38: #{tpu_custom_call.1} parent=11 // pred_check_branch
          %521 = sbr.rel (%p519) target = $region40
        $region39: #{tpu_custom_call.1} parent=11 // pred_region
          _
        $region40: #{tpu_custom_call.1} parent=11 // pred_fallthru
          _
        // Predicated region
        $region41: #{tpu_custom_call.1} parent=11 // pred_check
          %p522 = pneg %p231
        $region42: #{tpu_custom_call.1} parent=11 // pred_check_branch
          %524 = sbr.rel (%p522) target = $region44
        $region43: #{tpu_custom_call.1} parent=11 // pred_region
          _
        $region44: #{tpu_custom_call.1} parent=11 // pred_fallthru
          _
        // Predicated region
        $region45: #{tpu_custom_call.1} parent=11 // pred_check
          %p525 = pneg %p252
        $region46: #{tpu_custom_call.1} parent=11 // pred_check_branch
          %527 = sbr.rel (%p525) target = $region48
        $region47: #{tpu_custom_call.1} parent=11 // pred_region
          _
        $region48: #{tpu_custom_call.1} parent=11 // pred_fallthru
          _
        // Predicated region
        $region49: #{tpu_custom_call.1} parent=11 // pred_check
          %p528 = pneg %p273
        $region50: #{tpu_custom_call.1} parent=11 // pred_check_branch
          %530 = sbr.rel (%p528) target = $region52
        $region51: #{tpu_custom_call.1} parent=11 // pred_region
          _
        $region52: #{tpu_custom_call.1} parent=11 // pred_fallthru
          _
        // Predicated region
        $region53: #{tpu_custom_call.1} parent=11 // pred_check
          %p531 = pneg %p294
        $region54: #{tpu_custom_call.1} parent=11 // pred_check_branch
          %533 = sbr.rel (%p531) target = $region56
        $region55: #{tpu_custom_call.1} parent=11 // pred_region
          _
        $region56: #{tpu_custom_call.1} parent=11 // pred_fallthru
          _
        // Predicated region
        $region57: #{tpu_custom_call.1} parent=11 // pred_check
          %p534 = pneg %p315
        $region58: #{tpu_custom_call.1} parent=11 // pred_check_branch
          %536 = sbr.rel (%p534) target = $region60
        $region59: #{tpu_custom_call.1} parent=11 // pred_region
          _
        $region60: #{tpu_custom_call.1} parent=11 // pred_fallthru
          _
        // Predicated region
        $region61: #{tpu_custom_call.1} parent=11 // pred_check
          %p537 = pneg %p336
        $region62: #{tpu_custom_call.1} parent=11 // pred_check_branch
          %539 = sbr.rel (%p537) target = $region64
        $region63: #{tpu_custom_call.1} parent=11 // pred_region
          %541 = vsyncadd [#allocation19], 0
          %s542 = sshll.u32 %s13, 4
          %s543 = int_to_ptr.hbm [resolvable:$true] %s542
          %s544 = sshll.u32 [#allocation18], 4
          %s545 = int_to_ptr.vmem [resolvable:$true] %s544
          %550 = dma.hbm_to_vmem [thread:$0]  %s543, 2048, %s545, [#allocation19], 128, 128, 8
        $region64: #{tpu_custom_call.1} parent=11 // pred_fallthru
          _
        // Predicated region
        $region65: #{tpu_custom_call.1} parent=11 // pred_check
          %p551 = pneg %p357
        $region66: #{tpu_custom_call.1} parent=11 // pred_check_branch
          %553 = sbr.rel (%p551) target = $region68
        $region67: #{tpu_custom_call.1} parent=11 // pred_region
          _
        $region68: #{tpu_custom_call.1} parent=11 // pred_fallthru
          _
        // Predicated region
        $region69: #{tpu_custom_call.1} parent=11 // pred_check
          %p554 = pneg %p378
        $region70: #{tpu_custom_call.1} parent=11 // pred_check_branch
          %556 = sbr.rel (%p554) target = $region72
        $region71: #{tpu_custom_call.1} parent=11 // pred_region
          %558 = vsyncadd [#allocation19], 0
          %s559 = sshll.u32 %s15, 4
          %s560 = int_to_ptr.hbm [resolvable:$true] %s559
          %s561 = sshll.u32 [#allocation20], 4
          %s562 = int_to_ptr.vmem [resolvable:$true] %s561
          %567 = dma.hbm_to_vmem [thread:$0]  %s560, 512, %s562, [#allocation19], 128, 128, 8
        $region72: #{tpu_custom_call.1} parent=11 // pred_fallthru
          _
        // Predicated region
        $region73: #{tpu_custom_call.1} parent=11 // pred_check
          %p568 = pneg %p399
        $region74: #{tpu_custom_call.1} parent=11 // pred_check_branch
          %570 = sbr.rel (%p568) target = $region76
        $region75: #{tpu_custom_call.1} parent=11 // pred_region
          _
        $region76: #{tpu_custom_call.1} parent=11 // pred_fallthru
          _
      $region12: #{tpu_custom_call.1} parent=5 // pred_fallthru
        _
      %p571 = scmp.lt.s32.totalorder %s37, 4
      // Predicated region
      $region77: #{tpu_custom_call.1} parent=5 // pred_check
        %p572 = pneg %p571
      $region78: #{tpu_custom_call.1} parent=5 // pred_check_branch
        %574 = sbr.rel (%p572) target = $region80
      $region79: #{tpu_custom_call.1} parent=5 // pred_region
        // Predicated region
        $region81: #{tpu_custom_call.1} parent=79 // pred_check
          %p575 = pneg %p57
        $region82: #{tpu_custom_call.1} parent=79 // pred_check_branch
          %577 = sbr.rel (%p575) target = $region84
        $region83: #{tpu_custom_call.1} parent=79 // pred_region
          %s578 = sand.u32 %s47, 1
          %s579 = scalar_lea.sflag [#allocation10], %s578
          %s580 = sand.u32 %s47, 1
          %s581 = smul.addr %s580, 8
          %s582 = scalar_lea.vmem [#allocation9], %s581
          %584 = vsyncadd %s579, 0
          %s585 = smul.addr %s37, 8
          %s586 = scalar_lea.hbm %s0, %s585
          %s588 = sshll.u32 %s586, 4
          %s589 = int_to_ptr.hbm [resolvable:$true] %s588
          %s590 = sshll.u32 %s582, 4
          %s591 = int_to_ptr.vmem [resolvable:$true] %s590
          %593 = dma.hbm_to_vmem [thread:$0]  %s589, 128, %s591, %s579
        $region84: #{tpu_custom_call.1} parent=79 // pred_fallthru
          _
      $region80: #{tpu_custom_call.1} parent=5 // pred_fallthru
        _
      %p594 = scmp.le.s32.totalorder 1, %s37
      %p595 = scmp.lt.s32.totalorder %s37, 5
      %p596 = pnand %p594, %p595
      %p597 = pneg %p596
      // Predicated region
      $region85: #{tpu_custom_call.1} parent=5 // pred_check
        _
      $region86: #{tpu_custom_call.1} parent=5 // pred_check_branch
        %599 = sbr.rel (%p596) target = $region88
      $region87: #{tpu_custom_call.1} parent=5 // pred_region
        %s600 = ssub.s32 %s37, 1
        %s601 = sand.u32 %s50, 1
        %s602 = scalar_lea.sflag [#allocation10], %s601
        %s603 = sand.u32 %s50, 1
        %s604 = smul.addr %s603, 8
        %s605 = scalar_lea.vmem [#allocation9], %s604
        // Predicated region
        $region89: #{tpu_custom_call.1} parent=87 // pred_check
          %p606 = pneg %p63
        $region90: #{tpu_custom_call.1} parent=87 // pred_check_branch
          %608 = sbr.rel (%p606) target = $region92
        $region91: #{tpu_custom_call.1} parent=87 // pred_region
          %610 = dma.done %s602, 128
        $region92: #{tpu_custom_call.1} parent=87 // pred_fallthru
          _
        // Predicated region
        $region93: #{tpu_custom_call.1} parent=87 // pred_check
          %p611 = pneg %p84
        $region94: #{tpu_custom_call.1} parent=87 // pred_check_branch
          %613 = sbr.rel (%p611) target = $region96
        $region95: #{tpu_custom_call.1} parent=87 // pred_region
          %615 = dma.done [#allocation13], 128
        $region96: #{tpu_custom_call.1} parent=87 // pred_fallthru
          _
        // Predicated region
        $region97: #{tpu_custom_call.1} parent=87 // pred_check
          %p616 = pneg %p105
        $region98: #{tpu_custom_call.1} parent=87 // pred_check_branch
          %618 = sbr.rel (%p616) target = $region100
        $region99: #{tpu_custom_call.1} parent=87 // pred_region
          %620 = dma.done [#allocation13], 1024
        $region100: #{tpu_custom_call.1} parent=87 // pred_fallthru
          _
        // Predicated region
        $region101: #{tpu_custom_call.1} parent=87 // pred_check
          %p621 = pneg %p147
        $region102: #{tpu_custom_call.1} parent=87 // pred_check_branch
          %623 = sbr.rel (%p621) target = $region104
        $region103: #{tpu_custom_call.1} parent=87 // pred_region
          %625 = dma.done [#allocation16], 1024
        $region104: #{tpu_custom_call.1} parent=87 // pred_fallthru
          _
        // Predicated region
        $region105: #{tpu_custom_call.1} parent=87 // pred_check
          %p626 = pneg %p189
        $region106: #{tpu_custom_call.1} parent=87 // pred_check_branch
          %628 = sbr.rel (%p626) target = $region108
        $region107: #{tpu_custom_call.1} parent=87 // pred_region
          %630 = dma.done [#allocation16], 16
        $region108: #{tpu_custom_call.1} parent=87 // pred_fallthru
          _
        // Predicated region
        $region109: #{tpu_custom_call.1} parent=87 // pred_check
          %p631 = pneg %p336
        $region110: #{tpu_custom_call.1} parent=87 // pred_check_branch
          %633 = sbr.rel (%p631) target = $region112
        $region111: #{tpu_custom_call.1} parent=87 // pred_region
          %635 = dma.done [#allocation19], 2048
        $region112: #{tpu_custom_call.1} parent=87 // pred_fallthru
          _
        // Predicated region
        $region113: #{tpu_custom_call.1} parent=87 // pred_check
          %p636 = pneg %p378
        $region114: #{tpu_custom_call.1} parent=87 // pred_check_branch
          %638 = sbr.rel (%p636) target = $region116
        $region115: #{tpu_custom_call.1} parent=87 // pred_region
          %640 = dma.done [#allocation19], 512
        $region116: #{tpu_custom_call.1} parent=87 // pred_fallthru
          _
        %s641 = sand.u32 %s50, 1
        %s642 = scalar_lea.sflag [#allocation10], %s641
        %s643 = sand.u32 %s50, 1
        %s644 = smul.addr %s643, 8
        %s645 = scalar_lea.vmem [#allocation9], %s644
        %p646 = pneg %p63
        %p647 = pneg %p60
        %p648 = pneg %p84
        %p649 = pneg %p81
        %p650 = pneg %p105
        %p651 = pneg %p102
        %p652 = pneg %p126
        %p653 = pneg %p123
        %p654 = pneg %p147
        %p655 = pneg %p144
        %p656 = pneg %p168
        %p657 = pneg %p165
        %p658 = pneg %p189
        %p659 = pneg %p186
        %p660 = pneg %p210
        %p661 = pneg %p207
        %p662 = pneg %p231
        %p663 = pneg %p228
        %p664 = pneg %p252
        %p665 = pneg %p249
        %p666 = pneg %p273
        %p667 = pneg %p270
        %p668 = pneg %p294
        %p669 = pneg %p291
        %p670 = pneg %p315
        %p671 = pneg %p312
        %p672 = pneg %p336
        %p673 = pneg %p333
        %p674 = pneg %p357
        %p675 = pneg %p354
        %p676 = pneg %p378
        %p677 = pneg %p375
        %p678 = pneg %p399
        %p679 = pneg %p396
        %p680 = pneg %p425
        %p681 = pneg %p422
        %s682 = sand.u32 %s412, 1
        %s683 = scalar_lea.sflag [#allocation11], %s682
        %s684 = sand.u32 %s412, 1
        %s685 = smul.addr %s684, 8
        %s686 = scalar_lea.vmem [#allocation21], %s685
        %p687 = pneg %p446
        %p688 = pneg %p443
        %p689 = scmp.eq.s32.totalorder %s42, 0
        // Predicated region
        $region117: #{tpu_custom_call.1} parent=87 // pred_check
          %p690 = pneg %p689
        $region118: #{tpu_custom_call.1} parent=87 // pred_check_branch
          %692 = sbr.rel (%p690) target = $region120
        $region119: #{tpu_custom_call.1} parent=87 // pred_region
          %vm693 = vcmask 261120
          %694 = vst.msk [vmem:[#allocation2] sm:$0xff] %vm693, 0.0
          %695 = vst.msk [vmem:[#allocation3] sm:$0xff] %vm693, 0.0
          %696 = vst.msk [vmem:[#allocation4] sm:$0xff] %vm693, 0.0
          %697 = vst.msk [vmem:[#allocation5] sm:$0xff] %vm693, 0.0
          %v698 = vld [vmem:[#allocation14] sm:$0xff]
          %v699 = vld [vmem:[#allocation14 + $0x8] sm:$0xff]
          %v700 = vld [vmem:[#allocation14 + $0x10] sm:$0xff]
          %v701 = vld [vmem:[#allocation14 + $0x18] sm:$0xff]
          %v702 = vld [vmem:[#allocation14 + $0x20] sm:$0xff]
          %v703 = vld [vmem:[#allocation14 + $0x28] sm:$0xff]
          %v704 = vld [vmem:[#allocation14 + $0x30] sm:$0xff]
          %v705 = vld [vmem:[#allocation14 + $0x38] sm:$0xff]
          %v706 = vld [vmem:[%s7] sm:$0xff]
          %v707 = vld [vmem:[%s7 + $0x8] sm:$0xff]
          %v708 = vld [vmem:[%s7 + $0x10] sm:$0xff]
          %v709 = vld [vmem:[%s7 + $0x18] sm:$0xff]
          %v710 = vld [vmem:[%s7 + $0x20] sm:$0xff]
          %v711 = vld [vmem:[%s7 + $0x28] sm:$0xff]
          %v712 = vld [vmem:[%s7 + $0x30] sm:$0xff]
          %v713 = vld [vmem:[%s7 + $0x38] sm:$0xff]
          %vm714 = vcmask 523264
          %v716 = vsel %vm714, %v698, 0
          %v719 = vsel %vm714, %v699, 0
          %v722 = vsel %vm714, %v700, 0
          %v725 = vsel %vm714, %v701, 0
          %v728 = vsel %vm714, %v702, 0
          %v731 = vsel %vm714, %v703, 0
          %v734 = vsel %vm714, %v704, 0
          %v737 = vsel %vm714, %v705, 0
          %739 = vmatpush.msra.mxu0 0.0
          %740 = vmatpush.msra.mxu0 0.0
          %741 = vmatpush.msra.mxu0 0.0
          %742 = vmatpush.msra.mxu0 0.0
          %743 = vmatpush.msra.mxu0 0.0
          %744 = vmatpush.msra.mxu0 0.0
          %745 = vmatpush.msra.mxu0 0.0
          %746 = vmatpush.msra.mxu0 0.0
          %747 = vmatpush.msra.mxu0 %v713
          %748 = vmatpush.msra.mxu0 %v712
          %749 = vmatpush.msra.mxu0 %v711
          %750 = vmatpush.msra.mxu0 %v710
          %751 = vmatpush.msra.mxu0 %v709
          %752 = vmatpush.msra.mxu0 %v708
          %753 = vmatpush.msra.mxu0 %v707
          %754 = vmatpush.msra.mxu0 %v706
          %755 = vmatmul.f32.gmra.mxu0 %v716
          %v756 = vpop.f32.mrf.mxu0
          %v757 = vadd.f32 0.0, %v756
          %758 = vmatmul.f32.gmra.mxu0 %v719
          %v759 = vpop.f32.mrf.mxu0
          %v760 = vadd.f32 0.0, %v759
          %761 = vmatmul.f32.gmra.mxu0 %v722
          %v762 = vpop.f32.mrf.mxu0
          %v763 = vadd.f32 0.0, %v762
          %764 = vmatmul.f32.gmra.mxu0 %v725
          %v765 = vpop.f32.mrf.mxu0
          %v766 = vadd.f32 0.0, %v765
          %767 = vmatmul.f32.gmra.mxu0 %v728
          %v768 = vpop.f32.mrf.mxu0
          %v769 = vadd.f32 0.0, %v768
          %770 = vmatmul.f32.gmra.mxu0 %v731
          %v771 = vpop.f32.mrf.mxu0
          %v772 = vadd.f32 0.0, %v771
          %773 = vmatmul.f32.gmra.mxu0 %v734
          %v774 = vpop.f32.mrf.mxu0
          %v775 = vadd.f32 0.0, %v774
          %776 = vmatmul.f32.gmra.mxu0 %v737
          %v777 = vpop.f32.mrf.mxu0
          %v778 = vadd.f32 0.0, %v777
          %779 = vdwg.mxu0
          %v780 = vld [vmem:[%s8] sm:$0x1]
          %v782 = vperm.slane %v780, 0
          %v784 = vadd.f32 %v757, %v782
          %v785 = vadd.f32 %v760, %v782
          %v786 = vadd.f32 %v763, %v782
          %v787 = vadd.f32 %v766, %v782
          %v788 = vadd.f32 %v769, %v782
          %v789 = vadd.f32 %v772, %v782
          %v790 = vadd.f32 %v775, %v782
          %v791 = vadd.f32 %v778, %v782
          %792 = vst.msk [vmem:[#allocation6] sm:$0xff] %vm693, %v784
          %793 = vst.msk [vmem:[#allocation6 + $0x8] sm:$0xff] %vm693, %v785
          %794 = vst.msk [vmem:[#allocation6 + $0x10] sm:$0xff] %vm693, %v786
          %795 = vst.msk [vmem:[#allocation6 + $0x18] sm:$0xff] %vm693, %v787
          %796 = vst.msk [vmem:[#allocation6 + $0x20] sm:$0xff] %vm693, %v788
          %797 = vst.msk [vmem:[#allocation6 + $0x28] sm:$0xff] %vm693, %v789
          %798 = vst.msk [vmem:[#allocation6 + $0x30] sm:$0xff] %vm693, %v790
          %799 = vst.msk [vmem:[#allocation6 + $0x38] sm:$0xff] %vm693, %v791
          %v800 = vld [vmem:[#allocation12] sm:$0xff]
          %v801 = vld [vmem:[#allocation15] sm:$0xff]
          %v802 = vld [vmem:[#allocation15 + $0x8] sm:$0xff]
          %v803 = vld [vmem:[#allocation15 + $0x10] sm:$0xff]
          %v804 = vld [vmem:[#allocation15 + $0x18] sm:$0xff]
          %v805 = vld [vmem:[#allocation15 + $0x20] sm:$0xff]
          %v806 = vld [vmem:[#allocation15 + $0x28] sm:$0xff]
          %v807 = vld [vmem:[#allocation15 + $0x30] sm:$0xff]
          %v808 = vld [vmem:[#allocation15 + $0x38] sm:$0xff]
          %v809 = vld [vmem:[#allocation17] sm:$0x1]
          %v811 = vperm.slane %v809, 0
          %v814 = vsel %vm714, %v800, 0
          %816 = vmatpush.msra.mxu0 0.0
          %817 = vmatpush.msra.mxu0 0.0
          %818 = vmatpush.msra.mxu0 0.0
          %819 = vmatpush.msra.mxu0 0.0
          %820 = vmatpush.msra.mxu0 0.0
          %821 = vmatpush.msra.mxu0 0.0
          %822 = vmatpush.msra.mxu0 0.0
          %823 = vmatpush.msra.mxu0 0.0
          %824 = vmatpush.msra.mxu0 %v808
          %825 = vmatpush.msra.mxu0 %v807
          %826 = vmatpush.msra.mxu0 %v806
          %827 = vmatpush.msra.mxu0 %v805
          %828 = vmatpush.msra.mxu0 %v804
          %829 = vmatpush.msra.mxu0 %v803
          %830 = vmatpush.msra.mxu0 %v802
          %831 = vmatpush.msra.mxu0 %v801
          %832 = vmatmul.f32.gmra.mxu0 %v814
          %v833 = vpop.f32.mrf.mxu0
          %v834 = vadd.f32 %v811, %v833
          %835 = vdwg.mxu0
          %836 = vst [vmem:[#allocation7] sm:$0xff] %v834
        $region120: #{tpu_custom_call.1} parent=87 // pred_fallthru
          _
        %v837 = vld [vmem:[#allocation2] sm:$0xff]
        %v838 = vld [vmem:[#allocation3] sm:$0xff]
        %v839 = vld [vmem:[#allocation4] sm:$0xff]
        %v840 = vld [vmem:[#allocation5] sm:$0xff]
        %v841 = vld [vmem:[%s605] sm:$0xff]
        %v842 = vld [vmem:[#allocation14] sm:$0xff]
        %v843 = vld [vmem:[#allocation14 + $0x8] sm:$0xff]
        %v844 = vld [vmem:[#allocation14 + $0x10] sm:$0xff]
        %v845 = vld [vmem:[#allocation14 + $0x18] sm:$0xff]
        %v846 = vld [vmem:[#allocation14 + $0x20] sm:$0xff]
        %v847 = vld [vmem:[#allocation14 + $0x28] sm:$0xff]
        %v848 = vld [vmem:[#allocation14 + $0x30] sm:$0xff]
        %v849 = vld [vmem:[#allocation14 + $0x38] sm:$0xff]
        %v850 = vld [vmem:[%s3] sm:$0xff]
        %v851 = vstv %s42
        %vm852 = vcmp.gt.s32.totalorder %v850, %v851
        %854 = vrot.lane.b32.xlu0 %v841, 32
        %v855 = vpop.permute.xlu0 %854
        %858 = vrot.lane.b32.xlu0 %v837, 48
        %v859 = vpop.permute.xlu0 %858
        %vm861 = vcmask 261120
        %v862 = vsel %vm861, %v839, %v855
        %vm863 = vcmask 392192
        %v864 = vsel %vm863, %v862, %v859
        %v865 = vld [vmem:[%s5] sm:$0xff]
        %v866 = vld [vmem:[%s5 + $0x8] sm:$0xff]
        %v867 = vld [vmem:[%s5 + $0x10] sm:$0xff]
        %v868 = vld [vmem:[%s5 + $0x18] sm:$0xff]
        %v869 = vld [vmem:[%s5 + $0x20] sm:$0xff]
        %v870 = vld [vmem:[%s5 + $0x28] sm:$0xff]
        %v871 = vld [vmem:[%s5 + $0x30] sm:$0xff]
        %v872 = vld [vmem:[%s5 + $0x38] sm:$0xff]
        %v873 = vld [vmem:[%s5 + $0x40] sm:$0xff]
        %v874 = vld [vmem:[%s5 + $0x48] sm:$0xff]
        %v875 = vld [vmem:[#allocation7] sm:$0xff]
        %vm876 = vcmask 654336
        %v878 = vsel %vm876, %v864, 0
        %880 = vmatpush.msra.mxu0 0.0
        %881 = vmatpush.msra.mxu0 0.0
        %882 = vmatpush.msra.mxu0 0.0
        %883 = vmatpush.msra.mxu0 0.0
        %884 = vmatpush.msra.mxu0 0.0
        %885 = vmatpush.msra.mxu0 0.0
        %886 = vmatpush.msra.mxu0 %v874
        %887 = vmatpush.msra.mxu0 %v873
        %888 = vmatpush.msra.mxu0 %v872
        %889 = vmatpush.msra.mxu0 %v871
        %890 = vmatpush.msra.mxu0 %v870
        %891 = vmatpush.msra.mxu0 %v869
        %892 = vmatpush.msra.mxu0 %v868
        %893 = vmatpush.msra.mxu0 %v867
        %894 = vmatpush.msra.mxu0 %v866
        %895 = vmatpush.msra.mxu0 %v865
        %896 = vmatmul.f32.gmra.mxu0 %v878
        %v897 = vpop.f32.mrf.mxu0
        %v898 = vadd.f32 %v875, %v897
        %899 = vdwg.mxu0
        %v900 = vxor.u32 %v898, 2147483648
        %v901 = vmul.f32 %v900, 1.442695
        %v902 = vpow.pop %v901
        %v903 = vadd.f32 %v902, 1.0
        %v904 = vrcp.pop %v903
        %v905 = vmul.f32 %v903, %v904
        %v906 = vsub.f32 1.0, %v905
        %v907 = vmul.f32 %v904, %v906
        %v908 = vadd.f32 %v904, %v907
        %vm909 = vweird.f32 %v903
        %vm910 = vweird.f32 %v904
        %vm911 = vmor %vm909, %vm910
        %v912 = vsel %vm911, %v904, %v908
        %v913 = vand.u32 2147483647, %v903
        %vm914 = vcmp.eq.f32.partialorder %v913, 8.507059e+37
        %v915 = vand.u32 %v903, 2147483648
        %v916 = vor.u32 1.1754944e-38, %v915
        %v917 = vsel %vm914, %v916, %v912
        %v918 = vmul.f32 1.0, %v917
        %v919 = vtanh.pop %v898
        %921 = vrot.lane.b32.xlu0 %v838, 32
        %v922 = vpop.permute.xlu0 %921
        %v924 = vmul.f32 %v918, %v922
        %926 = vrot.lane.b32.xlu0 %v919, 64
        %v927 = vpop.permute.xlu0 %926
        %v929 = vmul.f32 %v918, %v927
        %931 = vrot.lane.b32.xlu0 %v929, 32
        %v932 = vpop.permute.xlu0 %931
        %v934 = vadd.f32 %v924, %v932
        %v935 = vtanh.pop %v934
        %937 = vrot.lane.b32.xlu0 %v935, 64
        %v938 = vpop.permute.xlu0 %937
        %v940 = vmul.f32 %v918, %v938
        %v941 = vld [vmem:[%s9] sm:$0xff]
        %v942 = vld [vmem:[%s9 + $0x8] sm:$0xff]
        %v943 = vld [vmem:[%s9 + $0x10] sm:$0xff]
        %v944 = vld [vmem:[%s9 + $0x18] sm:$0xff]
        %v945 = vld [vmem:[%s10] sm:$0x1]
        %v947 = vperm.slane %v945, 0
        %950 = vrot.lane.b32.xlu0 %v940, 32
        %v951 = vpop.permute.xlu0 %950
        %v952 = vsel %vm861, %v951, 0
        %954 = vmatpush.msra.mxu0 0.0
        %955 = vmatpush.msra.mxu0 0.0
        %956 = vmatpush.msra.mxu0 0.0
        %957 = vmatpush.msra.mxu0 0.0
        %958 = vmatpush.msra.mxu0 0.0
        %959 = vmatpush.msra.mxu0 0.0
        %960 = vmatpush.msra.mxu0 0.0
        %961 = vmatpush.msra.mxu0 0.0
        %962 = vmatpush.msra.mxu0 0.0
        %963 = vmatpush.msra.mxu0 0.0
        %964 = vmatpush.msra.mxu0 0.0
        %965 = vmatpush.msra.mxu0 0.0
        %966 = vmatpush.msra.mxu0 %v944
        %967 = vmatpush.msra.mxu0 %v943
        %968 = vmatpush.msra.mxu0 %v942
        %969 = vmatpush.msra.mxu0 %v941
        %970 = vmatmul.f32.gmra.mxu0 %v952
        %v971 = vpop.f32.mrf.mxu0
        %v972 = vadd.f32 %v947, %v971
        %973 = vdwg.mxu0
        %v975 = vrot.slane %v972, 1
        %v976 = vrot.slane %v972, 2
        %v977 = vrot.slane %v972, 3
        %v978 = vrot.slane %v972, 4
        %v979 = vrot.slane %v972, 5
        %v980 = vrot.slane %v972, 6
        %v981 = vrot.slane %v972, 7
        %v982 = vld [vmem:[#allocation6] sm:$0xff]
        %v983 = vld [vmem:[#allocation6 + $0x8] sm:$0xff]
        %v984 = vld [vmem:[#allocation6 + $0x10] sm:$0xff]
        %v985 = vld [vmem:[#allocation6 + $0x18] sm:$0xff]
        %v986 = vld [vmem:[#allocation6 + $0x20] sm:$0xff]
        %v987 = vld [vmem:[#allocation6 + $0x28] sm:$0xff]
        %v988 = vld [vmem:[#allocation6 + $0x30] sm:$0xff]
        %v989 = vld [vmem:[#allocation6 + $0x38] sm:$0xff]
        %v990 = vperm.slane %v972, 0
        %v991 = vperm.slane %v975, 0
        %v992 = vperm.slane %v976, 0
        %v993 = vperm.slane %v977, 0
        %v994 = vperm.slane %v978, 0
        %v995 = vperm.slane %v979, 0
        %v996 = vperm.slane %v980, 0
        %v997 = vperm.slane %v981, 0
        %v1006 = vadd.f32 %v990, %v982
        %v1007 = vadd.f32 %v991, %v983
        %v1008 = vadd.f32 %v992, %v984
        %v1009 = vadd.f32 %v993, %v985
        %v1010 = vadd.f32 %v994, %v986
        %v1011 = vadd.f32 %v995, %v987
        %v1012 = vadd.f32 %v996, %v988
        %v1013 = vadd.f32 %v997, %v989
        %v1014 = vmax.f32 %v1006, 0.0
        %v1015 = vmax.f32 %v1007, 0.0
        %v1016 = vmax.f32 %v1008, 0.0
        %v1017 = vmax.f32 %v1009, 0.0
        %v1018 = vmax.f32 %v1010, 0.0
        %v1019 = vmax.f32 %v1011, 0.0
        %v1020 = vmax.f32 %v1012, 0.0
        %v1021 = vmax.f32 %v1013, 0.0
        %v1022 = vld [vmem:[%s11] sm:$0x1]
        %v1024 = vperm.slane %v1022, 0
        %v1026 = vmul.f32 %v1014, %v1024
        %v1027 = vmul.f32 %v1015, %v1024
        %v1028 = vmul.f32 %v1016, %v1024
        %v1029 = vmul.f32 %v1017, %v1024
        %v1030 = vmul.f32 %v1018, %v1024
        %v1031 = vmul.f32 %v1019, %v1024
        %v1032 = vmul.f32 %v1020, %v1024
        %v1033 = vmul.f32 %v1021, %v1024
        %v1034 = vsel %vm861, %v1026, 0.0
        %1035 = vadd.xlane.f32.xlu0 %v1034
        %v1036 = vpop.xlane.xlu0 %1035
        %v1037 = vsel %vm861, %v1027, 0.0
        %1038 = vadd.xlane.f32.xlu0 %v1037
        %v1039 = vpop.xlane.xlu0 %1038
        %v1040 = vsel %vm861, %v1028, 0.0
        %1041 = vadd.xlane.f32.xlu0 %v1040
        %v1042 = vpop.xlane.xlu0 %1041
        %v1043 = vsel %vm861, %v1029, 0.0
        %1044 = vadd.xlane.f32.xlu0 %v1043
        %v1045 = vpop.xlane.xlu0 %1044
        %v1046 = vsel %vm861, %v1030, 0.0
        %1047 = vadd.xlane.f32.xlu0 %v1046
        %v1048 = vpop.xlane.xlu0 %1047
        %v1049 = vsel %vm861, %v1031, 0.0
        %1050 = vadd.xlane.f32.xlu0 %v1049
        %v1051 = vpop.xlane.xlu0 %1050
        %v1052 = vsel %vm861, %v1032, 0.0
        %1053 = vadd.xlane.f32.xlu0 %v1052
        %v1054 = vpop.xlane.xlu0 %1053
        %v1055 = vsel %vm861, %v1033, 0.0
        %1056 = vadd.xlane.f32.xlu0 %v1055
        %v1057 = vpop.xlane.xlu0 %1056
        %v1058 = vld [vmem:[#allocation8] sm:$0x1]
        %v1060 = vperm.slane %v1058, 0
        %1061 = vset.pattern.permute.xlu0 0
        %1062 = vperm.xlu0 %1061, %v1060
        %v1063 = vpop.permute.xlu0 %1062
        %v1065 = vadd.f32 %v1036, %v1063
        %v1066 = vadd.f32 %v1039, %v1063
        %v1067 = vadd.f32 %v1042, %v1063
        %v1068 = vadd.f32 %v1045, %v1063
        %v1069 = vadd.f32 %v1048, %v1063
        %v1070 = vadd.f32 %v1051, %v1063
        %v1071 = vadd.f32 %v1054, %v1063
        %v1072 = vadd.f32 %v1057, %v1063
        %v1081 = vlaneseq
        %v1082 = vand.u32 %v1081, 127
        %v1083 = vperm.slane %v1065, %v1082
        %v1084 = vperm.slane %v1066, %v1082
        %v1085 = vperm.slane %v1067, %v1082
        %v1086 = vperm.slane %v1068, %v1082
        %v1087 = vperm.slane %v1069, %v1082
        %v1088 = vperm.slane %v1070, %v1082
        %v1089 = vperm.slane %v1071, %v1082
        %v1090 = vperm.slane %v1072, %v1082
        %vm1091 = vcmask 1041409
        %v1092 = vsel %vm1091, %v1084, %v1083
        %vm1093 = vcmask 1042434
        %v1094 = vsel %vm1093, %v1085, %v1092
        %vm1095 = vcmask 1043459
        %v1096 = vsel %vm1095, %v1086, %v1094
        %vm1097 = vcmask 1044484
        %v1098 = vsel %vm1097, %v1087, %v1096
        %vm1099 = vcmask 1045509
        %v1100 = vsel %vm1099, %v1088, %v1098
        %vm1101 = vcmask 1046534
        %v1102 = vsel %vm1101, %v1089, %v1100
        %vm1103 = vcmask 1047559
        %v1104 = vsel %vm1103, %v1090, %v1102
        %vm1106 = vcmask 64512
        %v1107 = vsel %vm1106, %v1104, -inf
        %1108 = vmax.xlane.f32.xlu0 %v1107
        %v1109 = vpop.xlane.xlu0 %1108
        %v1111 = vperm.slane %v1109, 0
        %v1112 = vperm.slane %v1109, 1
        %v1113 = vperm.slane %v1109, 2
        %v1114 = vperm.slane %v1109, 3
        %v1115 = vperm.slane %v1109, 4
        %v1116 = vperm.slane %v1109, 5
        %v1117 = vperm.slane %v1109, 6
        %v1118 = vperm.slane %v1109, 7
        %v1127 = vsub.f32 %v1065, %v1111
        %v1128 = vsub.f32 %v1066, %v1112
        %v1129 = vsub.f32 %v1067, %v1113
        %v1130 = vsub.f32 %v1068, %v1114
        %v1131 = vsub.f32 %v1069, %v1115
        %v1132 = vsub.f32 %v1070, %v1116
        %v1133 = vsub.f32 %v1071, %v1117
        %v1134 = vsub.f32 %v1072, %v1118
        %v1135 = vmul.f32 %v1127, 1.442695
        %v1136 = vpow.pop %v1135
        %v1137 = vmul.f32 %v1128, 1.442695
        %v1138 = vpow.pop %v1137
        %v1139 = vmul.f32 %v1129, 1.442695
        %v1140 = vpow.pop %v1139
        %v1141 = vmul.f32 %v1130, 1.442695
        %v1142 = vpow.pop %v1141
        %v1143 = vmul.f32 %v1131, 1.442695
        %v1144 = vpow.pop %v1143
        %v1145 = vmul.f32 %v1132, 1.442695
        %v1146 = vpow.pop %v1145
        %v1147 = vmul.f32 %v1133, 1.442695
        %v1148 = vpow.pop %v1147
        %v1149 = vmul.f32 %v1134, 1.442695
        %v1150 = vpow.pop %v1149
        %1159 = vset.pattern.permute.xlu0 0
        %1160 = vperm.xlu0 %1159, %v1136
        %v1161 = vpop.permute.xlu0 %1160
        %1162 = vset.pattern.permute.xlu0 0
        %1163 = vperm.xlu0 %1162, %v1138
        %v1164 = vpop.permute.xlu0 %1163
        %1165 = vset.pattern.permute.xlu0 0
        %1166 = vperm.xlu0 %1165, %v1140
        %v1167 = vpop.permute.xlu0 %1166
        %1168 = vset.pattern.permute.xlu0 0
        %1169 = vperm.xlu0 %1168, %v1142
        %v1170 = vpop.permute.xlu0 %1169
        %1171 = vset.pattern.permute.xlu0 0
        %1172 = vperm.xlu0 %1171, %v1144
        %v1173 = vpop.permute.xlu0 %1172
        %1174 = vset.pattern.permute.xlu0 0
        %1175 = vperm.xlu0 %1174, %v1146
        %v1176 = vpop.permute.xlu0 %1175
        %1177 = vset.pattern.permute.xlu0 0
        %1178 = vperm.xlu0 %1177, %v1148
        %v1179 = vpop.permute.xlu0 %1178
        %1180 = vset.pattern.permute.xlu0 0
        %1181 = vperm.xlu0 %1180, %v1150
        %v1182 = vpop.permute.xlu0 %1181
        %v1183 = vperm.slane %v1161, %v1082
        %v1184 = vperm.slane %v1164, %v1082
        %v1185 = vperm.slane %v1167, %v1082
        %v1186 = vperm.slane %v1170, %v1082
        %v1187 = vperm.slane %v1173, %v1082
        %v1188 = vperm.slane %v1176, %v1082
        %v1189 = vperm.slane %v1179, %v1082
        %v1190 = vperm.slane %v1182, %v1082
        %v1191 = vsel %vm1091, %v1184, %v1183
        %v1192 = vsel %vm1093, %v1185, %v1191
        %v1193 = vsel %vm1095, %v1186, %v1192
        %v1194 = vsel %vm1097, %v1187, %v1193
        %v1195 = vsel %vm1099, %v1188, %v1194
        %v1196 = vsel %vm1101, %v1189, %v1195
        %v1197 = vsel %vm1103, %v1190, %v1196
        %v1199 = vsel %vm1106, %v1197, 0.0
        %1200 = vadd.xlane.f32.xlu0 %v1199
        %v1201 = vpop.xlane.xlu0 %1200
        %v1202 = vrcp.pop %v1201
        %v1204 = vperm.slane %v1202, 0
        %v1205 = vperm.slane %v1202, 1
        %v1206 = vperm.slane %v1202, 2
        %v1207 = vperm.slane %v1202, 3
        %v1208 = vperm.slane %v1202, 4
        %v1209 = vperm.slane %v1202, 5
        %v1210 = vperm.slane %v1202, 6
        %v1211 = vperm.slane %v1202, 7
        %v1220 = vmul.f32 %v1136, %v1204
        %v1221 = vmul.f32 %v1138, %v1205
        %v1222 = vmul.f32 %v1140, %v1206
        %v1223 = vmul.f32 %v1142, %v1207
        %v1224 = vmul.f32 %v1144, %v1208
        %v1225 = vmul.f32 %v1146, %v1209
        %v1226 = vmul.f32 %v1148, %v1210
        %v1227 = vmul.f32 %v1150, %v1211
        %1229 = vset.pattern.permute.xlu0 0
        %1230 = vperm.xlu0 %1229, %v1220
        %v1231 = vpop.permute.xlu0 %1230
        %1234 = vset.pattern.permute.xlu0 0
        %1235 = vperm.xlu0 %1234, %v1221
        %v1236 = vpop.permute.xlu0 %1235
        %1239 = vset.pattern.permute.xlu0 0
        %1240 = vperm.xlu0 %1239, %v1222
        %v1241 = vpop.permute.xlu0 %1240
        %1244 = vset.pattern.permute.xlu0 0
        %1245 = vperm.xlu0 %1244, %v1223
        %v1246 = vpop.permute.xlu0 %1245
        %1249 = vset.pattern.permute.xlu0 0
        %1250 = vperm.xlu0 %1249, %v1224
        %v1251 = vpop.permute.xlu0 %1250
        %1254 = vset.pattern.permute.xlu0 0
        %1255 = vperm.xlu0 %1254, %v1225
        %v1256 = vpop.permute.xlu0 %1255
        %1259 = vset.pattern.permute.xlu0 0
        %1260 = vperm.xlu0 %1259, %v1226
        %v1261 = vpop.permute.xlu0 %1260
        %1264 = vset.pattern.permute.xlu0 0
        %1265 = vperm.xlu0 %1264, %v1227
        %v1266 = vpop.permute.xlu0 %1265
        %v1268 = vmul.f32 %v842, %v1231
        %v1269 = vmul.f32 %v843, %v1236
        %v1270 = vmul.f32 %v844, %v1241
        %v1271 = vmul.f32 %v845, %v1246
        %v1272 = vmul.f32 %v846, %v1251
        %v1273 = vmul.f32 %v847, %v1256
        %v1274 = vmul.f32 %v848, %v1261
        %v1275 = vmul.f32 %v849, %v1266
        %vm1276 = vcmask 523264
        %v1277 = vsel %vm1276, %v1268, 0.0
        %v1278 = vrot.slane %v1277, 4
        %v1279 = vadd.f32 %v1277, %v1278
        %v1280 = vrot.slane %v1279, 2
        %v1281 = vadd.f32 %v1279, %v1280
        %v1282 = vrot.slane %v1281, 1
        %v1283 = vadd.f32 %v1281, %v1282
        %v1284 = vsel %vm1276, %v1269, 0.0
        %v1285 = vrot.slane %v1284, 4
        %v1286 = vadd.f32 %v1284, %v1285
        %v1287 = vrot.slane %v1286, 2
        %v1288 = vadd.f32 %v1286, %v1287
        %v1289 = vrot.slane %v1288, 1
        %v1290 = vadd.f32 %v1288, %v1289
        %v1291 = vsel %vm1276, %v1270, 0.0
        %v1292 = vrot.slane %v1291, 4
        %v1293 = vadd.f32 %v1291, %v1292
        %v1294 = vrot.slane %v1293, 2
        %v1295 = vadd.f32 %v1293, %v1294
        %v1296 = vrot.slane %v1295, 1
        %v1297 = vadd.f32 %v1295, %v1296
        %v1298 = vsel %vm1276, %v1271, 0.0
        %v1299 = vrot.slane %v1298, 4
        %v1300 = vadd.f32 %v1298, %v1299
        %v1301 = vrot.slane %v1300, 2
        %v1302 = vadd.f32 %v1300, %v1301
        %v1303 = vrot.slane %v1302, 1
        %v1304 = vadd.f32 %v1302, %v1303
        %v1305 = vsel %vm1276, %v1272, 0.0
        %v1306 = vrot.slane %v1305, 4
        %v1307 = vadd.f32 %v1305, %v1306
        %v1308 = vrot.slane %v1307, 2
        %v1309 = vadd.f32 %v1307, %v1308
        %v1310 = vrot.slane %v1309, 1
        %v1311 = vadd.f32 %v1309, %v1310
        %v1312 = vsel %vm1276, %v1273, 0.0
        %v1313 = vrot.slane %v1312, 4
        %v1314 = vadd.f32 %v1312, %v1313
        %v1315 = vrot.slane %v1314, 2
        %v1316 = vadd.f32 %v1314, %v1315
        %v1317 = vrot.slane %v1316, 1
        %v1318 = vadd.f32 %v1316, %v1317
        %v1319 = vsel %vm1276, %v1274, 0.0
        %v1320 = vrot.slane %v1319, 4
        %v1321 = vadd.f32 %v1319, %v1320
        %v1322 = vrot.slane %v1321, 2
        %v1323 = vadd.f32 %v1321, %v1322
        %v1324 = vrot.slane %v1323, 1
        %v1325 = vadd.f32 %v1323, %v1324
        %v1326 = vsel %vm1276, %v1275, 0.0
        %v1327 = vrot.slane %v1326, 4
        %v1328 = vadd.f32 %v1326, %v1327
        %v1329 = vrot.slane %v1328, 2
        %v1330 = vadd.f32 %v1328, %v1329
        %v1331 = vrot.slane %v1330, 1
        %v1332 = vadd.f32 %v1330, %v1331
        %v1341 = vsel %vm1091, %v1290, %v1283
        %v1342 = vsel %vm1093, %v1297, %v1341
        %v1343 = vsel %vm1095, %v1304, %v1342
        %v1344 = vsel %vm1097, %v1311, %v1343
        %v1345 = vsel %vm1099, %v1318, %v1344
        %v1346 = vsel %vm1101, %v1325, %v1345
        %v1347 = vsel %vm1103, %v1332, %v1346
        %1349 = vrot.lane.b32.xlu0 %v940, 96
        %v1350 = vpop.permute.xlu0 %1349
        %1353 = vrot.lane.b32.xlu0 %v839, 96
        %v1354 = vpop.permute.xlu0 %1353
        %v1356 = vsel %vm1276, %v1347, %v1350
        %vm1357 = vcmask 785408
        %v1358 = vsel %vm1357, %v1356, %v1354
        %v1359 = vld [vmem:[#allocation18] sm:$0xff]
        %v1360 = vld [vmem:[#allocation18 + $0x8] sm:$0xff]
        %v1361 = vld [vmem:[#allocation18 + $0x10] sm:$0xff]
        %v1362 = vld [vmem:[#allocation18 + $0x18] sm:$0xff]
        %v1363 = vld [vmem:[#allocation18 + $0x20] sm:$0xff]
        %v1364 = vld [vmem:[#allocation18 + $0x28] sm:$0xff]
        %v1365 = vld [vmem:[#allocation18 + $0x30] sm:$0xff]
        %v1366 = vld [vmem:[#allocation18 + $0x38] sm:$0xff]
        %v1367 = vld [vmem:[#allocation18 + $0x40] sm:$0xff]
        %v1368 = vld [vmem:[#allocation18 + $0x48] sm:$0xff]
        %v1369 = vld [vmem:[#allocation18 + $0x50] sm:$0xff]
        %v1370 = vld [vmem:[#allocation18 + $0x58] sm:$0xff]
        %v1371 = vld [vmem:[#allocation18 + $0x60] sm:$0xff]
        %v1372 = vld [vmem:[#allocation18 + $0x68] sm:$0xff]
        %v1373 = vld [vmem:[#allocation18 + $0x70] sm:$0xff]
        %v1374 = vld [vmem:[#allocation18 + $0x78] sm:$0xff]
        %v1375 = vld [vmem:[%s14] sm:$0x1]
        %v1377 = vperm.slane %v1375, 0
        %1379 = vmatpush.msra.mxu0 %v1374
        %1380 = vmatpush.msra.mxu0 %v1373
        %1381 = vmatpush.msra.mxu0 %v1372
        %1382 = vmatpush.msra.mxu0 %v1371
        %1383 = vmatpush.msra.mxu0 %v1370
        %1384 = vmatpush.msra.mxu0 %v1369
        %1385 = vmatpush.msra.mxu0 %v1368
        %1386 = vmatpush.msra.mxu0 %v1367
        %1387 = vmatpush.msra.mxu0 %v1366
        %1388 = vmatpush.msra.mxu0 %v1365
        %1389 = vmatpush.msra.mxu0 %v1364
        %1390 = vmatpush.msra.mxu0 %v1363
        %1391 = vmatpush.msra.mxu0 %v1362
        %1392 = vmatpush.msra.mxu0 %v1361
        %1393 = vmatpush.msra.mxu0 %v1360
        %1394 = vmatpush.msra.mxu0 %v1359
        %1395 = vmatmul.f32.gmra.mxu0 %v1358
        %v1396 = vpop.f32.mrf.mxu0
        %v1397 = vadd.f32 %v1377, %v1396
        %1398 = vdwg.mxu0
        %v1399 = vxor.u32 %v1397, 2147483648
        %v1400 = vmul.f32 %v1399, 1.442695
        %v1401 = vpow.pop %v1400
        %v1402 = vadd.f32 %v1401, 1.0
        %v1403 = vrcp.pop %v1402
        %v1404 = vmul.f32 %v1402, %v1403
        %v1405 = vsub.f32 1.0, %v1404
        %v1406 = vmul.f32 %v1403, %v1405
        %v1407 = vadd.f32 %v1403, %v1406
        %vm1408 = vweird.f32 %v1402
        %vm1409 = vweird.f32 %v1403
        %vm1410 = vmor %vm1408, %vm1409
        %v1411 = vsel %vm1410, %v1403, %v1407
        %v1412 = vand.u32 2147483647, %v1402
        %vm1413 = vcmp.eq.f32.partialorder %v1412, 8.507059e+37
        %v1414 = vand.u32 %v1402, 2147483648
        %v1415 = vor.u32 1.1754944e-38, %v1414
        %v1416 = vsel %vm1413, %v1415, %v1411
        %v1417 = vmul.f32 1.0, %v1416
        %v1418 = vtanh.pop %v1397
        %1420 = vrot.lane.b32.xlu0 %v840, 32
        %v1421 = vpop.permute.xlu0 %1420
        %v1423 = vmul.f32 %v1417, %v1421
        %1425 = vrot.lane.b32.xlu0 %v1418, 64
        %v1426 = vpop.permute.xlu0 %1425
        %v1428 = vmul.f32 %v1417, %v1426
        %1430 = vrot.lane.b32.xlu0 %v1428, 32
        %v1431 = vpop.permute.xlu0 %1430
        %v1433 = vadd.f32 %v1423, %v1431
        %v1434 = vtanh.pop %v1433
        %1436 = vrot.lane.b32.xlu0 %v1434, 64
        %v1437 = vpop.permute.xlu0 %1436
        %v1439 = vmul.f32 %v1417, %v1437
        %v1440 = vld [vmem:[#allocation20] sm:$0xff]
        %v1441 = vld [vmem:[#allocation20 + $0x8] sm:$0xff]
        %v1442 = vld [vmem:[#allocation20 + $0x10] sm:$0xff]
        %v1443 = vld [vmem:[#allocation20 + $0x18] sm:$0xff]
        %v1444 = vld [vmem:[%s16] sm:$0x1]
        %v1446 = vperm.slane %v1444, 0
        %1449 = vrot.lane.b32.xlu0 %v1439, 32
        %v1450 = vpop.permute.xlu0 %1449
        %v1451 = vsel %vm861, %v1450, 0
        %1453 = vmatpush.msra.mxu0 0.0
        %1454 = vmatpush.msra.mxu0 0.0
        %1455 = vmatpush.msra.mxu0 0.0
        %1456 = vmatpush.msra.mxu0 0.0
        %1457 = vmatpush.msra.mxu0 0.0
        %1458 = vmatpush.msra.mxu0 0.0
        %1459 = vmatpush.msra.mxu0 0.0
        %1460 = vmatpush.msra.mxu0 0.0
        %1461 = vmatpush.msra.mxu0 0.0
        %1462 = vmatpush.msra.mxu0 0.0
        %1463 = vmatpush.msra.mxu0 0.0
        %1464 = vmatpush.msra.mxu0 0.0
        %1465 = vmatpush.msra.mxu0 %v1443
        %1466 = vmatpush.msra.mxu0 %v1442
        %1467 = vmatpush.msra.mxu0 %v1441
        %1468 = vmatpush.msra.mxu0 %v1440
        %1469 = vmatmul.f32.gmra.mxu0 %v1451
        %v1470 = vpop.f32.mrf.mxu0
        %v1471 = vadd.f32 %v1446, %v1470
        %1472 = vdwg.mxu0
        %v1473 = vsel %vm852, 1, 0
        %1474 = vset.pattern.permute.xlu0 0
        %1475 = vperm.xlu0 %1474, %v1473
        %v1476 = vpop.permute.xlu0 %1475
        %vm1477 = vcmp.eq.s32.totalorder %v1476, 1
        %1478 = vrot.lane.b32.xlu0 %v837, 96
        %v1479 = vpop.permute.xlu0 %1478
        %v1481 = vsel %vm1477, %v940, %v1479
        %1483 = vrot.lane.b32.xlu0 %v1481, 32
        %v1484 = vpop.permute.xlu0 %1483
        %1486 = vst.msk [vmem:[#allocation2] sm:$0xff] %vm861, %v1484
        %v1487 = vsel %vm1477, %v934, %v922
        %1489 = vrot.lane.b32.xlu0 %v1487, 96
        %v1490 = vpop.permute.xlu0 %1489
        %1492 = vst.msk [vmem:[#allocation3] sm:$0xff] %vm861, %v1490
        %v1493 = vsel %vm1477, %v1439, %v1354
        %1495 = vrot.lane.b32.xlu0 %v1493, 32
        %v1496 = vpop.permute.xlu0 %1495
        %1498 = vst.msk [vmem:[#allocation4] sm:$0xff] %vm861, %v1496
        %v1499 = vsel %vm1477, %v1433, %v1421
        %1501 = vrot.lane.b32.xlu0 %v1499, 96
        %v1502 = vpop.permute.xlu0 %1501
        %1504 = vst.msk [vmem:[#allocation5] sm:$0xff] %vm861, %v1502
        %v1505 = vsel %vm1477, %v1471, 0.0
        %1506 = vst [vmem:[%s686] sm:$0xff] %v1505
        %v1507 = vperm.slane %v1231, %v1082
        %v1508 = vperm.slane %v1236, %v1082
        %v1509 = vperm.slane %v1241, %v1082
        %v1510 = vperm.slane %v1246, %v1082
        %v1511 = vperm.slane %v1251, %v1082
        %v1512 = vperm.slane %v1256, %v1082
        %v1513 = vperm.slane %v1261, %v1082
        %v1514 = vperm.slane %v1266, %v1082
        %v1515 = vsel %vm1091, %v1508, %v1507
        %v1516 = vsel %vm1093, %v1509, %v1515
        %v1517 = vsel %vm1095, %v1510, %v1516
        %v1518 = vsel %vm1097, %v1511, %v1517
        %v1519 = vsel %vm1099, %v1512, %v1518
        %v1520 = vsel %vm1101, %v1513, %v1519
        %v1521 = vsel %vm1103, %v1514, %v1520
        %1523 = vst.msk [vmem:[#allocation22] sm:$0xff] %vm1106, %v1521
        %s1524 = sand.u32 %s412, 1
        %s1525 = scalar_lea.sflag [#allocation11], %s1524
        %s1526 = sand.u32 %s412, 1
        %s1527 = smul.addr %s1526, 8
        %s1528 = scalar_lea.vmem [#allocation21], %s1527
        // Predicated region
        $region121: #{tpu_custom_call.1} parent=87 // pred_check
          %p1529 = pneg %p422
        $region122: #{tpu_custom_call.1} parent=87 // pred_check_branch
          %1531 = sbr.rel (%p1529) target = $region124
        $region123: #{tpu_custom_call.1} parent=87 // pred_region
          %1533 = vsyncadd %s1525, 0
          %s1534 = smul.addr %s42, 8
          %s1535 = scalar_lea.hbm %s17, %s1534
          %s1537 = sshll.u32 %s1528, 4
          %s1538 = int_to_ptr.vmem [resolvable:$true] %s1537
          %s1539 = sshll.u32 %s1535, 4
          %s1540 = int_to_ptr.hbm [resolvable:$true] %s1539
          %1542 = dma.vmem_to_hbm [thread:$0]  %s1538, 128, %s1540, %s1525
        $region124: #{tpu_custom_call.1} parent=87 // pred_fallthru
          _
        // Predicated region
        $region125: #{tpu_custom_call.1} parent=87 // pred_check
          %p1543 = pneg %p443
        $region126: #{tpu_custom_call.1} parent=87 // pred_check_branch
          %1545 = sbr.rel (%p1543) target = $region128
        $region127: #{tpu_custom_call.1} parent=87 // pred_region
          %1547 = vsyncadd [#allocation23], 0
          %s1549 = sshll.u32 [#allocation22], 4
          %s1550 = int_to_ptr.vmem [resolvable:$true] %s1549
          %s1551 = sshll.u32 %s18, 4
          %s1552 = int_to_ptr.hbm [resolvable:$true] %s1551
          %1554 = dma.vmem_to_hbm [thread:$0]  %s1550, 128, %s1552, [#allocation23]
        $region128: #{tpu_custom_call.1} parent=87 // pred_fallthru
          _
        // Predicated region
        $region129: #{tpu_custom_call.1} parent=87 // pred_check
          %p1555 = pneg %p443
        $region130: #{tpu_custom_call.1} parent=87 // pred_check_branch
          %1557 = sbr.rel (%p1555) target = $region132
        $region131: #{tpu_custom_call.1} parent=87 // pred_region
          %1559 = dma.done [#allocation23], 128
        $region132: #{tpu_custom_call.1} parent=87 // pred_fallthru
          _
      $region88: #{tpu_custom_call.1} parent=5 // pred_fallthru
        _
      %p1560 = scmp.le.s32.totalorder 2, %s37
      // Predicated region
      $region133: #{tpu_custom_call.1} parent=5 // pred_check
        %p1561 = pneg %p1560
      $region134: #{tpu_custom_call.1} parent=5 // pred_check_branch
        %1563 = sbr.rel (%p1561) target = $region136
      $region135: #{tpu_custom_call.1} parent=5 // pred_region
        %s1564 = ssub.s32 %s37, 2
        // Predicated region
        $region137: #{tpu_custom_call.1} parent=135 // pred_check
          %p1565 = pneg %p428
        $region138: #{tpu_custom_call.1} parent=135 // pred_check_branch
          %1567 = sbr.rel (%p1565) target = $region140
        $region139: #{tpu_custom_call.1} parent=135 // pred_region
          %s1568 = sand.u32 %s413, 1
          %s1569 = scalar_lea.sflag [#allocation11], %s1568
          %s1570 = sand.u32 %s413, 1
          %s1571 = smul.addr %s1570, 8
          %s1572 = scalar_lea.vmem [#allocation21], %s1571
          %1574 = dma.done %s1569, 128
        $region140: #{tpu_custom_call.1} parent=135 // pred_fallthru
          _
      $region136: #{tpu_custom_call.1} parent=5 // pred_fallthru
        _
    $region6: #{tpu_custom_call.1} parent=1 // loop_footer
      %s41 = sadd.s32 1, %s37
    $region7: #{tpu_custom_call.1} parent=1 // loop_footer_branch
      %36 = sbr.rel target = $region3
    $region8: #{tpu_custom_call.1} parent=1 // loop_exit
      _
    %1575 = vsyncpa [#allocation10], 1
    %s1576 = scalar_lea.sflag [#allocation10], 1
    %1577 = vsyncpa %s1576, 1
    %1578 = vsyncpa [#allocation13], 1
    %1579 = vsyncpa [#allocation16], 1
    %1580 = vsyncpa [#allocation19], 1
    %1581 = vsyncpa [#allocation11], 1
    %s1582 = scalar_lea.sflag [#allocation11], 1
    %1583 = vsyncpa %s1582, 1
    %1584 = vsyncpa [#allocation23], 1

</llo_original>
